<compile_context>
chip_gen: v7x
topology: tpu7x:2x2x1
jax: 0.10.0
libtpu: 0.0.40
codegen_flags: <defaults>
</compile_context>

<pallas_src>
import functools

import jax
import jax.numpy as jnp
from jax.experimental import pallas as pl
from jax.experimental.pallas import tpu as pltpu


def _tpu_vmem_capacity_bytes():
    try:
        return int(pltpu.get_tpu_info().vmem_capacity_bytes)
    except Exception:
        return 64 * 1024 * 1024        # conservative: v7x per-TC VMEM


def _vmem_limit_bytes():
    # Leave ~25% headroom for compiler-internal scratch / double buffers.
    return min(int(_tpu_vmem_capacity_bytes() * 3 // 4), 96 * 1024 * 1024)


def _pick_row_tile(n):
    """Row-tile target: 256 on 128-MiB-VMEM parts (v5e/v6e), 128 on v7x."""
    target = 128 if _tpu_vmem_capacity_bytes() <= 64 * 1024 * 1024 else 256
    return n if n <= target else target


# --------------------------------------------------------------------------
# Kernel 1: fused per-node prep — KNN scores + fused factored 1x1-conv proj.
# --------------------------------------------------------------------------
def _node_prep_kernel(xb_ref, xn_ref, xnt_ref, w_ref, b_ref,
                      scores_ref, base_t_ref, xwj_ref, *, cout):
    # xb_ref/xn_ref: (1, tn, C) bf16 (raw / normalized rows)
    # xnt_ref: (1, C, N) bf16 normalized, pre-transposed in the wrapper
    # w_ref: (C, 2*Cout) bf16 = [wi-wj | wj]      b_ref: (1, Cout) f32
    # scores_ref: (1, tn, N) bf16   base_t_ref: (1, Cout, tn) f32
    # xwj_ref: (1, tn, Cout) bf16
    xn = xn_ref[0]                                   # (tn, C)

    # KNN scores: cosine Gram matrix (dist = 2 - 2*score, top-k of +score ==
    # k nearest).  bf16 MXU operands, f32 accumulate, bf16 store — scores is
    # the dominant HBM stream of this kernel and the top_k read.
    s = jnp.dot(xn, xnt_ref[0], preferred_element_type=jnp.float32)
    scores_ref[0] = s.astype(scores_ref.dtype)

    # One fused projection matmul (single MXU weight push):
    #   proj = [ x@(wi-wj) | x@wj ]
    proj = jnp.dot(xb_ref[0], w_ref[...], preferred_element_type=jnp.float32)
    base = proj[:, :cout] + b_ref[...]               # bias folded once, f32
    base_t_ref[0] = base.T                           # lane-dense (Cout, tn)
    xwj_ref[0] = proj[:, cout:].astype(xwj_ref.dtype)  # bf16 gather stream


def node_prep(xb, xn_rows, xn_t, w_cat, bias):
    B, N, C = xb.shape
    Cout = w_cat.shape[1] // 2
    tn = _pick_row_tile(N)
    return pl.pallas_call(
        functools.partial(_node_prep_kernel, cout=Cout),
        out_shape=(
            jax.ShapeDtypeStruct((B, N, N), jnp.bfloat16),     # KNN scores
            jax.ShapeDtypeStruct((B, Cout, N), jnp.float32),   # base (lane-dense)
            jax.ShapeDtypeStruct((B, N, Cout), jnp.bfloat16),  # x@wj rows
        ),
        grid=(B, pl.cdiv(N, tn)),
        in_specs=[
            pl.BlockSpec((1, tn, C), lambda b, i: (b, i, 0)),
            pl.BlockSpec((1, tn, C), lambda b, i: (b, i, 0)),
            pl.BlockSpec((1, C, N), lambda b, i: (b, 0, 0)),
            pl.BlockSpec((C, 2 * Cout), lambda b, i: (0, 0)),
            pl.BlockSpec((1, Cout), lambda b, i: (0, 0)),
        ],
        out_specs=(
            pl.BlockSpec((1, tn, N), lambda b, i: (b, i, 0)),
            pl.BlockSpec((1, Cout, tn), lambda b, i: (b, 0, i)),
            pl.BlockSpec((1, tn, Cout), lambda b, i: (b, i, 0)),
        ),
        compiler_params=pltpu.CompilerParams(
            dimension_semantics=("parallel", "parallel"),
            vmem_limit_bytes=_vmem_limit_bytes()),
    )(xb, xn_rows, xn_t, w_cat, bias)


# --------------------------------------------------------------------------
# Kernel 2: running max over the K projected neighbors + base + ReLU,
#           lane-dense (Cout, tn) output tile.
# --------------------------------------------------------------------------
def _edge_max_kernel(g_ref, base_t_ref, o_ref, *, k):
    # g_ref: (1, K, tn, Cout) bf16   base_t_ref/o_ref: (1, Cout, tn) f32
    m = g_ref[0, 0]                               # bf16 running max
    for kk in range(1, k):                        # K small & static -> unrolled
        m = jnp.maximum(m, g_ref[0, kk])          # bf16 max is bit-identical
    mt = m.astype(jnp.float32).T                  # single upcast + XLU transpose
    # ReLU commutes with max; base (x_i part of the conv + bias) added once.
    o_ref[0] = jnp.maximum(mt + base_t_ref[0], 0.0)


def edge_max(gathered, base_t):
    B, K, N, Cout = gathered.shape
    tn = _pick_row_tile(N)
    return pl.pallas_call(
        functools.partial(_edge_max_kernel, k=K),
        out_shape=jax.ShapeDtypeStruct((B, Cout, N), jnp.float32),
        grid=(B, pl.cdiv(N, tn)),
        in_specs=[
            pl.BlockSpec((1, K, tn, Cout), lambda b, i: (b, 0, i, 0)),
            pl.BlockSpec((1, Cout, tn), lambda b, i: (b, 0, i)),
        ],
        out_specs=pl.BlockSpec((1, Cout, tn), lambda b, i: (b, 0, i)),
        compiler_params=pltpu.CompilerParams(
            dimension_semantics=("parallel", "parallel"),
            vmem_limit_bytes=_vmem_limit_bytes()),
    )(gathered, base_t)


# --------------------------------------------------------------------------
# DyGraphConv2d forward (r=1, conv='edge', act='relu', norm=None, bias=True)
# --------------------------------------------------------------------------
def dygraph_conv2d_forward(x_nchw, wi, wj, bias, k=9, dilation=1):
    B, C, H, W = x_nchw.shape
    N = H * W
    Cout = wi.shape[1]
    x = jnp.transpose(x_nchw.reshape(B, C, N), (0, 2, 1)).astype(jnp.float32)  # (B,N,C)

    # TODO(synk): the reference forward also runs KMeans clustering whose output
    # (labels, centers) is immediately discarded (`pass`); skipped (no effect).
    # TODO(synk): r > 1 branch (avg_pool2d -> y) not implemented; default r=1.
    # TODO(synk): relative_pos (None by default) additive bias not modeled.

    # DenseDilatedKnnGraph: L2-normalize per node (F.normalize, eps=1e-12),
    # cosine scores, top-(k*d), dilate.  Rows and columns of the Gram matrix
    # come from the SAME bf16-cast tensor (consistent self-similarity).
    xn = x / jnp.maximum(jnp.linalg.norm(x, axis=-1, keepdims=True), 1e-12)
    xb = x.astype(jnp.bfloat16)
    xn_rows = xn.astype(jnp.bfloat16)
    xn_t = jnp.swapaxes(xn_rows, 1, 2)              # (B, C, N): one XLA transpose

    # Fused factored conv weights: W_cat = [wi - wj | wj]  (C, 2*Cout).
    w_cat = jnp.concatenate([wi - wj, wj], axis=1).astype(jnp.bfloat16)

    scores, base_t, xwj = node_prep(xb, xn_rows, xn_t, w_cat,
                                    bias.astype(jnp.float32))   # Pallas kernel 1

    # TODO(synk): streaming in-kernel top-9 (emit only (B,N,K) indices, never
    # the (B,N,N) scores) is the remaining big lever; XLA sort stays here.
    _, nn_idx = jax.lax.top_k(scores, k * dilation)  # nearest = largest cosine
    nn_idx = nn_idx[:, :, ::dilation]                # DenseDilated, stochastic=False
    # edge_index[1] (centers) is arange(N): the x_i term is already in `base`.

    # Gather the *projected* (Cout-wide, bf16) neighbor rows, laid out
    # (B, K, N, Cout) so kernel 2 streams clean per-k slabs.
    # TODO(synk): fuse this gather into edge_max (scalar-prefetched nn_idx +
    # batched in-kernel DMA row gathers) to drop this HBM round trip; per-row
    # Cout*2-byte DMAs need descriptor batching to win, so XLA gather kept.
    gathered = jax.vmap(lambda tbl, idx: tbl[idx])(xwj, jnp.swapaxes(nn_idx, 1, 2))

    out_t = edge_max(gathered, base_t)               # Pallas kernel 2, (B,Cout,N)

    # max over K keepdim=True -> (B, Cout, N, 1) -> reshape(B, -1, H, W):
    # output is already channel-major, so this is a pure reshape.
    return out_t.reshape(B, Cout, H, W)


# --------------------------------------------------------------------------
# Deterministic parameter init (Conv2d(2C, Cout, 1, bias=True), PyTorch-style
# kaiming-uniform bounds), built in-script.
# --------------------------------------------------------------------------
def init_params(key, in_channels, out_channels):
    fan_in = 2 * in_channels  # kernel 1x1
    bound = 1.0 / jnp.sqrt(jnp.float32(fan_in))
    kw, kb = jax.random.split(key)
    w = jax.random.uniform(kw, (2 * in_channels, out_channels), jnp.float32, -bound, bound)
    b = jax.random.uniform(kb, (1, out_channels), jnp.float32, -bound, bound)
    wi = w[:in_channels]       # multiplies x_i
    wj = w[in_channels:]       # multiplies (x_j - x_i)
    return wi, wj, b


if __name__ == "__main__":
    key = jax.random.PRNGKey(0)
    k_x, k_p = jax.random.split(key)

    B, C, H, W = 2, 16, 16, 16
    Cout, K = 32, 9

    x = jax.random.normal(k_x, (B, C, H, W), jnp.float32)
    wi, wj, bias = init_params(k_p, C, Cout)

    fwd = jax.jit(lambda a: dygraph_conv2d_forward(a, wi, wj, bias, k=K, dilation=1))
    out = fwd(x)
    jax.block_until_ready(out)

    assert out.shape == (B, Cout, H, W), out.shape
    assert out.dtype == jnp.float32
    assert bool(jnp.isfinite(out).all())
    print("KERNEL_OK")
</pallas_src>

<mosaic_0001>
module attributes {stable_mosaic.version = 11 : i64} {
  func.func @_node_prep_kernel(%arg0: i32, %arg1: i32, %arg2: memref<1x128x16xbf16, #tpu.memory_space<vmem>>, %arg3: memref<1x128x16xbf16, #tpu.memory_space<vmem>>, %arg4: memref<1x16x256xbf16, #tpu.memory_space<vmem>>, %arg5: memref<16x64xbf16, #tpu.memory_space<vmem>>, %arg6: memref<1x32xf32, #tpu.memory_space<vmem>>, %arg7: memref<1x128x256xbf16, #tpu.memory_space<vmem>>, %arg8: memref<1x32x128xf32, #tpu.memory_space<vmem>>, %arg9: memref<1x128x32xbf16, #tpu.memory_space<vmem>>) attributes {dimension_semantics = [#tpu.dimension_semantics<parallel>, #tpu.dimension_semantics<parallel>], iteration_bounds = array<i64: 2, 2>, scalar_prefetch = 0 : i64, scratch_operands = 0 : i64, tpu.core_type = #tpu.core_type<tc>, window_params = [{transform_indices = @transform_0, window_bounds = array<i64: 1, 128, 16>}, {transform_indices = @transform_1, window_bounds = array<i64: 1, 128, 16>}, {transform_indices = @transform_2, window_bounds = array<i64: 1, 16, 256>}, {pipeline_mode = #tpu.pipeline_mode<synchronous>, transform_indices = @transform_3, window_bounds = array<i64: 16, 64>}, {pipeline_mode = #tpu.pipeline_mode<synchronous>, transform_indices = @transform_4, window_bounds = array<i64: 1, 32>}, {transform_indices = @transform_5, window_bounds = array<i64: 1, 128, 256>}, {transform_indices = @transform_6, window_bounds = array<i64: 1, 32, 128>}, {transform_indices = @transform_7, window_bounds = array<i64: 1, 128, 32>}]} {
    %c0 = arith.constant 0 : index
    %c0_0 = arith.constant 0 : index
    %c0_1 = arith.constant 0 : index
    %0 = vector.load %arg3[%c0, %c0_0, %c0_1] : memref<1x128x16xbf16, #tpu.memory_space<vmem>>, vector<1x128x16xbf16>
    %1 = vector.shape_cast %0 : vector<1x128x16xbf16> to vector<128x16xbf16>
    %c0_2 = arith.constant 0 : index
    %c0_3 = arith.constant 0 : index
    %c0_4 = arith.constant 0 : index
    %2 = vector.load %arg4[%c0_2, %c0_3, %c0_4] : memref<1x16x256xbf16, #tpu.memory_space<vmem>>, vector<1x16x256xbf16>
    %3 = vector.shape_cast %2 : vector<1x16x256xbf16> to vector<16x256xbf16>
    %cst = arith.constant dense<0.000000e+00> : vector<128x256xf32>
    %4 = tpu.matmul %1, %3, %cst {dimension_numbers = #tpu.dot_dimension_numbers<[1], [0], [0], [1], [0, 0, 1, 1], [], []>} : vector<128x16xbf16>, vector<16x256xbf16>, vector<128x256xf32> -> vector<128x256xf32>
    %5 = arith.truncf %4 : vector<128x256xf32> to vector<128x256xbf16>
    %c0_5 = arith.constant 0 : index
    %c0_6 = arith.constant 0 : index
    %c0_7 = arith.constant 0 : index
    %6 = vector.load %arg7[%c0_5, %c0_6, %c0_7] : memref<1x128x256xbf16, #tpu.memory_space<vmem>>, vector<1x128x256xbf16>
    %7 = vector.shape_cast %6 : vector<1x128x256xbf16> to vector<128x256xbf16>
    %8 = vector.shape_cast %5 : vector<128x256xbf16> to vector<1x128x256xbf16>
    tpu.vector_store %arg7[%c0_5, %c0_6, %c0_7], %8 {strides = array<i32>} : memref<1x128x256xbf16, #tpu.memory_space<vmem>>, vector<1x128x256xbf16>,
    %c0_8 = arith.constant 0 : index
    %c0_9 = arith.constant 0 : index
    %c0_10 = arith.constant 0 : index
    %9 = vector.load %arg2[%c0_8, %c0_9, %c0_10] : memref<1x128x16xbf16, #tpu.memory_space<vmem>>, vector<1x128x16xbf16>
    %10 = vector.shape_cast %9 : vector<1x128x16xbf16> to vector<128x16xbf16>
    %c0_11 = arith.constant 0 : index
    %c0_12 = arith.constant 0 : index
    %11 = vector.load %arg5[%c0_11, %c0_12] : memref<16x64xbf16, #tpu.memory_space<vmem>>, vector<16x64xbf16>
    %cst_13 = arith.constant dense<0.000000e+00> : vector<128x64xf32>
    %12 = tpu.matmul %10, %11, %cst_13 {dimension_numbers = #tpu.dot_dimension_numbers<[1], [0], [0], [1], [0, 0, 1, 1], [], []>} : vector<128x16xbf16>, vector<16x64xbf16>, vector<128x64xf32> -> vector<128x64xf32>
    %13 = vector.extract_strided_slice %12 {offsets = [0, 0], sizes = [128, 32], strides = [1, 1]} : vector<128x64xf32> to vector<128x32xf32>
    %c0_14 = arith.constant 0 : index
    %c0_15 = arith.constant 0 : index
    %14 = vector.load %arg6[%c0_14, %c0_15] : memref<1x32xf32, #tpu.memory_space<vmem>>, vector<1x32xf32>
    %15 = vector.broadcast %14 : vector<1x32xf32> to vector<128x32xf32>
    %16 = arith.addf %13, %15 : vector<128x32xf32>
    %17 = tpu.transpose %16, [1, 0] : vector<128x32xf32> -> vector<32x128xf32>
    %c0_16 = arith.constant 0 : index
    %c0_17 = arith.constant 0 : index
    %c0_18 = arith.constant 0 : index
    %18 = vector.load %arg8[%c0_16, %c0_17, %c0_18] : memref<1x32x128xf32, #tpu.memory_space<vmem>>, vector<1x32x128xf32>
    %19 = vector.shape_cast %18 : vector<1x32x128xf32> to vector<32x128xf32>
    %20 = vector.shape_cast %17 : vector<32x128xf32> to vector<1x32x128xf32>
    tpu.vector_store %arg8[%c0_16, %c0_17, %c0_18], %20 {strides = array<i32>} : memref<1x32x128xf32, #tpu.memory_space<vmem>>, vector<1x32x128xf32>,
    %21 = vector.extract_strided_slice %12 {offsets = [0, 32], sizes = [128, 32], strides = [1, 1]} : vector<128x64xf32> to vector<128x32xf32>
    %22 = arith.truncf %21 : vector<128x32xf32> to vector<128x32xbf16>
    %c0_19 = arith.constant 0 : index
    %c0_20 = arith.constant 0 : index
    %c0_21 = arith.constant 0 : index
    %23 = vector.load %arg9[%c0_19, %c0_20, %c0_21] : memref<1x128x32xbf16, #tpu.memory_space<vmem>>, vector<1x128x32xbf16>
    %24 = vector.shape_cast %23 : vector<1x128x32xbf16> to vector<128x32xbf16>
    %25 = vector.shape_cast %22 : vector<128x32xbf16> to vector<1x128x32xbf16>
    tpu.vector_store %arg9[%c0_19, %c0_20, %c0_21], %25 {strides = array<i32>} : memref<1x128x32xbf16, #tpu.memory_space<vmem>>, vector<1x128x32xbf16>,
    return
  }
  func.func @transform_0(%arg0: i32, %arg1: i32) -> (i32, i32, i32) {
    %c0_i32 = arith.constant 0 : i32
    %c0_i32_0 = arith.constant 0 : i32
    return %arg0, %arg1, %c0_i32 : i32, i32, i32
  }
  func.func @transform_1(%arg0: i32, %arg1: i32) -> (i32, i32, i32) {
    %c0_i32 = arith.constant 0 : i32
    %c0_i32_0 = arith.constant 0 : i32
    return %arg0, %arg1, %c0_i32 : i32, i32, i32
  }
  func.func @transform_2(%arg0: i32, %arg1: i32) -> (i32, i32, i32) {
    %c0_i32 = arith.constant 0 : i32
    %c0_i32_0 = arith.constant 0 : i32
    %c0_i32_1 = arith.constant 0 : i32
    return %arg0, %c0_i32, %c0_i32_0 : i32, i32, i32
  }
  func.func @transform_3(%arg0: i32, %arg1: i32) -> (i32, i32) {
    %c0_i32 = arith.constant 0 : i32
    %c0_i32_0 = arith.constant 0 : i32
    %c0_i32_1 = arith.constant 0 : i32
    return %c0_i32, %c0_i32_0 : i32, i32
  }
  func.func @transform_4(%arg0: i32, %arg1: i32) -> (i32, i32) {
    %c0_i32 = arith.constant 0 : i32
    %c0_i32_0 = arith.constant 0 : i32
    %c0_i32_1 = arith.constant 0 : i32
    return %c0_i32, %c0_i32_0 : i32, i32
  }
  func.func @transform_5(%arg0: i32, %arg1: i32) -> (i32, i32, i32) {
    %c0_i32 = arith.constant 0 : i32
    %c0_i32_0 = arith.constant 0 : i32
    return %arg0, %arg1, %c0_i32 : i32, i32, i32
  }
  func.func @transform_6(%arg0: i32, %arg1: i32) -> (i32, i32, i32) {
    %c0_i32 = arith.constant 0 : i32
    %c0_i32_0 = arith.constant 0 : i32
    return %arg0, %c0_i32, %arg1 : i32, i32, i32
  }
  func.func @transform_7(%arg0: i32, %arg1: i32) -> (i32, i32, i32) {
    %c0_i32 = arith.constant 0 : i32
    %c0_i32_0 = arith.constant 0 : i32
    return %arg0, %arg1, %c0_i32 : i32, i32, i32
  }
}

module attributes {stable_mosaic.version = 11 : i64} {
  func.func @_edge_max_kernel(%arg0: i32, %arg1: i32, %arg2: memref<1x9x128x32xbf16, #tpu.memory_space<vmem>>, %arg3: memref<1x32x128xf32, #tpu.memory_space<vmem>>, %arg4: memref<1x32x128xf32, #tpu.memory_space<vmem>>) attributes {dimension_semantics = [#tpu.dimension_semantics<parallel>, #tpu.dimension_semantics<parallel>], iteration_bounds = array<i64: 2, 2>, scalar_prefetch = 0 : i64, scratch_operands = 0 : i64, tpu.core_type = #tpu.core_type<tc>, window_params = [{transform_indices = @transform_0, window_bounds = array<i64: 1, 9, 128, 32>}, {transform_indices = @transform_1, window_bounds = array<i64: 1, 32, 128>}, {transform_indices = @transform_2, window_bounds = array<i64: 1, 32, 128>}]} {
    %c0 = arith.constant 0 : index
    %c0_0 = arith.constant 0 : index
    %c0_1 = arith.constant 0 : index
    %c0_2 = arith.constant 0 : index
    %0 = vector.load %arg2[%c0, %c0_0, %c0_1, %c0_2] : memref<1x9x128x32xbf16, #tpu.memory_space<vmem>>, vector<1x1x128x32xbf16>
    %1 = vector.shape_cast %0 : vector<1x1x128x32xbf16> to vector<128x32xbf16>
    %c0_3 = arith.constant 0 : index
    %c1 = arith.constant 1 : index
    %c0_4 = arith.constant 0 : index
    %c0_5 = arith.constant 0 : index
    %2 = vector.load %arg2[%c0_3, %c1, %c0_4, %c0_5] : memref<1x9x128x32xbf16, #tpu.memory_space<vmem>>, vector<1x1x128x32xbf16>
    %3 = vector.shape_cast %2 : vector<1x1x128x32xbf16> to vector<128x32xbf16>
    %4 = arith.maximumf %1, %3 : vector<128x32xbf16>
    %c0_6 = arith.constant 0 : index
    %c2 = arith.constant 2 : index
    %c0_7 = arith.constant 0 : index
    %c0_8 = arith.constant 0 : index
    %5 = vector.load %arg2[%c0_6, %c2, %c0_7, %c0_8] : memref<1x9x128x32xbf16, #tpu.memory_space<vmem>>, vector<1x1x128x32xbf16>
    %6 = vector.shape_cast %5 : vector<1x1x128x32xbf16> to vector<128x32xbf16>
    %7 = arith.maximumf %4, %6 : vector<128x32xbf16>
    %c0_9 = arith.constant 0 : index
    %c3 = arith.constant 3 : index
    %c0_10 = arith.constant 0 : index
    %c0_11 = arith.constant 0 : index
    %8 = vector.load %arg2[%c0_9, %c3, %c0_10, %c0_11] : memref<1x9x128x32xbf16, #tpu.memory_space<vmem>>, vector<1x1x128x32xbf16>
    %9 = vector.shape_cast %8 : vector<1x1x128x32xbf16> to vector<128x32xbf16>
    %10 = arith.maximumf %7, %9 : vector<128x32xbf16>
    %c0_12 = arith.constant 0 : index
    %c4 = arith.constant 4 : index
    %c0_13 = arith.constant 0 : index
    %c0_14 = arith.constant 0 : index
    %11 = vector.load %arg2[%c0_12, %c4, %c0_13, %c0_14] : memref<1x9x128x32xbf16, #tpu.memory_space<vmem>>, vector<1x1x128x32xbf16>
    %12 = vector.shape_cast %11 : vector<1x1x128x32xbf16> to vector<128x32xbf16>
    %13 = arith.maximumf %10, %12 : vector<128x32xbf16>
    %c0_15 = arith.constant 0 : index
    %c5 = arith.constant 5 : index
    %c0_16 = arith.constant 0 : index
    %c0_17 = arith.constant 0 : index
    %14 = vector.load %arg2[%c0_15, %c5, %c0_16, %c0_17] : memref<1x9x128x32xbf16, #tpu.memory_space<vmem>>, vector<1x1x128x32xbf16>
    %15 = vector.shape_cast %14 : vector<1x1x128x32xbf16> to vector<128x32xbf16>
    %16 = arith.maximumf %13, %15 : vector<128x32xbf16>
    %c0_18 = arith.constant 0 : index
    %c6 = arith.constant 6 : index
    %c0_19 = arith.constant 0 : index
    %c0_20 = arith.constant 0 : index
    %17 = vector.load %arg2[%c0_18, %c6, %c0_19, %c0_20] : memref<1x9x128x32xbf16, #tpu.memory_space<vmem>>, vector<1x1x128x32xbf16>
    %18 = vector.shape_cast %17 : vector<1x1x128x32xbf16> to vector<128x32xbf16>
    %19 = arith.maximumf %16, %18 : vector<128x32xbf16>
    %c0_21 = arith.constant 0 : index
    %c7 = arith.constant 7 : index
    %c0_22 = arith.constant 0 : index
    %c0_23 = arith.constant 0 : index
    %20 = vector.load %arg2[%c0_21, %c7, %c0_22, %c0_23] : memref<1x9x128x32xbf16, #tpu.memory_space<vmem>>, vector<1x1x128x32xbf16>
    %21 = vector.shape_cast %20 : vector<1x1x128x32xbf16> to vector<128x32xbf16>
    %22 = arith.maximumf %19, %21 : vector<128x32xbf16>
    %c0_24 = arith.constant 0 : index
    %c8 = arith.constant 8 : index
    %c0_25 = arith.constant 0 : index
    %c0_26 = arith.constant 0 : index
    %23 = vector.load %arg2[%c0_24, %c8, %c0_25, %c0_26] : memref<1x9x128x32xbf16, #tpu.memory_space<vmem>>, vector<1x1x128x32xbf16>
    %24 = vector.shape_cast %23 : vector<1x1x128x32xbf16> to vector<128x32xbf16>
    %25 = arith.maximumf %22, %24 : vector<128x32xbf16>
    %26 = arith.extf %25 : vector<128x32xbf16> to vector<128x32xf32>
    %27 = tpu.transpose %26, [1, 0] : vector<128x32xf32> -> vector<32x128xf32>
    %c0_27 = arith.constant 0 : index
    %c0_28 = arith.constant 0 : index
    %c0_29 = arith.constant 0 : index
    %28 = vector.load %arg3[%c0_27, %c0_28, %c0_29] : memref<1x32x128xf32, #tpu.memory_space<vmem>>, vector<1x32x128xf32>
    %29 = vector.shape_cast %28 : vector<1x32x128xf32> to vector<32x128xf32>
    %30 = arith.addf %27, %29 : vector<32x128xf32>
    %cst = arith.constant 0.000000e+00 : f32
    %31 = vector.broadcast %cst : f32 to vector<32x128xf32>
    %32 = arith.maximumf %30, %31 : vector<32x128xf32>
    %c0_30 = arith.constant 0 : index
    %c0_31 = arith.constant 0 : index
    %c0_32 = arith.constant 0 : index
    %33 = vector.load %arg4[%c0_30, %c0_31, %c0_32] : memref<1x32x128xf32, #tpu.memory_space<vmem>>, vector<1x32x128xf32>
    %34 = vector.shape_cast %33 : vector<1x32x128xf32> to vector<32x128xf32>
    %35 = vector.shape_cast %32 : vector<32x128xf32> to vector<1x32x128xf32>
    tpu.vector_store %arg4[%c0_30, %c0_31, %c0_32], %35 {strides = array<i32>} : memref<1x32x128xf32, #tpu.memory_space<vmem>>, vector<1x32x128xf32>,
    return
  }
  func.func @transform_0(%arg0: i32, %arg1: i32) -> (i32, i32, i32, i32) {
    %c0_i32 = arith.constant 0 : i32
    %c0_i32_0 = arith.constant 0 : i32
    %c0_i32_1 = arith.constant 0 : i32
    return %arg0, %c0_i32, %arg1, %c0_i32_0 : i32, i32, i32, i32
  }
  func.func @transform_1(%arg0: i32, %arg1: i32) -> (i32, i32, i32) {
    %c0_i32 = arith.constant 0 : i32
    %c0_i32_0 = arith.constant 0 : i32
    return %arg0, %c0_i32, %arg1 : i32, i32, i32
  }
  func.func @transform_2(%arg0: i32, %arg1: i32) -> (i32, i32, i32) {
    %c0_i32 = arith.constant 0 : i32
    %c0_i32_0 = arith.constant 0 : i32
    return %arg0, %c0_i32, %arg1 : i32, i32, i32
  }
}

</mosaic_0001>

<llo_original>
// kernel: _lambda_.3
$region0: #{_lambda_.3}
  #allocation0 [shape = 'u32[]', space=smem, size = 0x4, offset = 0x4, fixed_abs, tag = 'smem constant byte address 0x4 - core index']
  #allocation1 [shape = 'u32[144,128]{1,0:T(1,128)}', space=vmem, size = 0x12000, scoped, tag = 'internal scratch']
  %s0 = inlined_call_operand.vmem [shape: bf16[2,9,256,32], index: 0, kind: input, shape index: {}]
  %s1 = inlined_call_operand.vmem [shape: f32[2,32,256], index: 1, kind: input, shape index: {}]
  %s2 = inlined_call_operand.vmem [shape: f32[2,32,256], index: 2, kind: output, shape index: {}]
  %s3 = sld [smem:[#allocation0]]
  $region154: #{_lambda_.3} parent=0
    _
  %s5 = ssub.s32 1, %s3
  %s6 = scalar_select 0, %s5, %s3
  $region1: #{_lambda_.3} parent=0
    #allocation2 [shape = 'u8[589824]{0}', space=vmem, size = 0x90000, scoped, tag = 'input window, operand 0']
    #allocation3 [shape = 'u8[32768]{0}', space=vmem, size = 0x8000, scoped, tag = 'input window, operand 1']
    #allocation4 [shape = 'u8[32768]{0}', space=vmem, size = 0x8000, scoped, tag = 'output window, operand 0']
    loop: start=0, step=1, limit=6
    $region2: #{_lambda_.3} parent=1 // loop_pre_header
      _
    $region3: #{_lambda_.3} parent=1 // loop_header
      %s8 = sphi 0, %s12
      %p9 = scmp.ge.s32.totalorder %s8, 6
      %s15 = sphi 0, %s27
      %s16 = sphi 0, %s23
      %s17 = sphi 0, %s15
      %s18 = sphi 0, %s16
      %s19 = sphi 0, %s17
      %s20 = sphi 0, %s18
      %s32 = sphi 0, %s34
      %s35 = sphi 0, %s32
      %s36 = sphi 0, %s35
      %s52 = sphi 0, %s36
      %s60 = sphi 0, %s62
      %s63 = sphi 0, %s60
      %s64 = sphi 0, %s63
      %s80 = sphi 0, %s64
      %s88 = sphi 0, %s90
      %s91 = sphi 0, %s88
      %s92 = sphi 0, %s91
      %s108 = sphi 0, %s92
    $region4: #{_lambda_.3} parent=1 // loop_header_branch
      %11 = sbr.rel (%p9) target = $region8
    $region5: #{_lambda_.3} parent=1 // loop_body
      %s13 = ssub.s32 %s8, 1
      %s14 = ssub.s32 %s8, 2
      %s21 = sadd.s32 1, %s16
      %p22 = scmp.ge.s32.totalorder %s21, 2
      %s23 = scalar_select %p22, 0, %s21
      %s24 = sadd.s32 1, %s15
      %s25 = scalar_select %p22, %s24, %s15
      %p26 = scmp.ge.s32.totalorder %s25, 2
      %s27 = scalar_select %p26, 0, %s25
      %s28 = ssub.s32 %s15, %s27
      %s29 = ssub.s32 %s16, %s23
      %s30 = sor.u32 %s28, %s29
      %p31 = scmp.eq.s32.totalorder %s30, 0
      %s33 = sadd.s32 %s32, 1
      %s34 = scalar_select %p31, %s32, %s33
      %p37 = pneg %p31
      %p38 = scmp.eq.s32.totalorder %s8, 3
      %p39 = por %p37, %p38
      %p40 = scmp.ne.s32.totalorder %s32, %s35
      %p41 = scmp.eq.s32.totalorder %s8, 0
      %p42 = por %p40, %p41
      %p43 = scmp.ne.s32.totalorder %s32, %s35
      %p44 = scmp.eq.s32.totalorder %s13, 3
      %p45 = por %p43, %p44
      %p46 = scmp.ne.s32.totalorder %s35, %s36
      %p47 = scmp.eq.s32.totalorder %s13, 0
      %p48 = por %p46, %p47
      %p49 = scmp.ne.s32.totalorder %s35, %s36
      %p50 = scmp.eq.s32.totalorder %s14, 3
      %p51 = por %p49, %p50
      %p53 = scmp.ne.s32.totalorder %s36, %s52
      %p54 = scmp.eq.s32.totalorder %s14, 0
      %p55 = por %p53, %p54
      %s56 = ssub.s32 %s15, %s27
      %s57 = ssub.s32 %s16, %s23
      %s58 = sor.u32 %s56, %s57
      %p59 = scmp.eq.s32.totalorder %s58, 0
      %s61 = sadd.s32 %s60, 1
      %s62 = scalar_select %p59, %s60, %s61
      %p65 = pneg %p59
      %p66 = scmp.eq.s32.totalorder %s8, 3
      %p67 = por %p65, %p66
      %p68 = scmp.ne.s32.totalorder %s60, %s63
      %p69 = scmp.eq.s32.totalorder %s8, 0
      %p70 = por %p68, %p69
      %p71 = scmp.ne.s32.totalorder %s60, %s63
      %p72 = scmp.eq.s32.totalorder %s13, 3
      %p73 = por %p71, %p72
      %p74 = scmp.ne.s32.totalorder %s63, %s64
      %p75 = scmp.eq.s32.totalorder %s13, 0
      %p76 = por %p74, %p75
      %p77 = scmp.ne.s32.totalorder %s63, %s64
      %p78 = scmp.eq.s32.totalorder %s14, 3
      %p79 = por %p77, %p78
      %p81 = scmp.ne.s32.totalorder %s64, %s80
      %p82 = scmp.eq.s32.totalorder %s14, 0
      %p83 = por %p81, %p82
      %s84 = ssub.s32 %s15, %s27
      %s85 = ssub.s32 %s16, %s23
      %s86 = sor.u32 %s84, %s85
      %p87 = scmp.eq.s32.totalorder %s86, 0
      %s89 = sadd.s32 %s88, 1
      %s90 = scalar_select %p87, %s88, %s89
      %p93 = pneg %p87
      %p94 = scmp.eq.s32.totalorder %s8, 3
      %p95 = por %p93, %p94
      %p96 = scmp.ne.s32.totalorder %s88, %s91
      %p97 = scmp.eq.s32.totalorder %s8, 0
      %p98 = por %p96, %p97
      %p99 = scmp.ne.s32.totalorder %s88, %s91
      %p100 = scmp.eq.s32.totalorder %s13, 3
      %p101 = por %p99, %p100
      %p102 = scmp.ne.s32.totalorder %s91, %s92
      %p103 = scmp.eq.s32.totalorder %s13, 0
      %p104 = por %p102, %p103
      %p105 = scmp.ne.s32.totalorder %s91, %s92
      %p106 = scmp.eq.s32.totalorder %s14, 3
      %p107 = por %p105, %p106
      %p109 = scmp.ne.s32.totalorder %s92, %s108
      %p110 = scmp.eq.s32.totalorder %s14, 0
      %p111 = por %p109, %p110
      %p112 = scmp.le.s32.totalorder 1, %s8
      %p113 = scmp.lt.s32.totalorder %s8, 5
      %p114 = pnand %p112, %p113
      %p115 = pneg %p114
      // Predicated region
      $region9: #{_lambda_.3} parent=5 // pred_check
        _
      $region10: #{_lambda_.3} parent=5 // pred_check_branch
        %117 = sbr.rel (%p114) target = $region12
      $region11: #{_lambda_.3} parent=5 // pred_region
        %s118 = ssub.s32 %s8, 1
      $region12: #{_lambda_.3} parent=5 // pred_fallthru
        _
      %p119 = scmp.lt.s32.totalorder %s8, 4
      // Predicated region
      $region13: #{_lambda_.3} parent=5 // pred_check
        %p120 = pneg %p119
      $region14: #{_lambda_.3} parent=5 // pred_check_branch
        %122 = sbr.rel (%p120) target = $region16
      $region15: #{_lambda_.3} parent=5 // pred_region
        // Predicated region
        $region17: #{_lambda_.3} parent=15 // pred_check
          %p123 = pneg %p42
        $region18: #{_lambda_.3} parent=15 // pred_check_branch
          %125 = sbr.rel (%p123) target = $region20
        $region19: #{_lambda_.3} parent=15 // pred_region
          %s126 = sand.u32 %s32, 1
          %s127 = sand.u32 %s32, 1
          %s128 = smul.addr %s127, 576
          %s129 = scalar_lea.vmem [#allocation2], %s128
          %s130 = smul.u32 16, %s16
          %s131 = smul.addr %s15, 288
          %s132 = sadd.s32 %s130, %s131
          %s133 = smul.addr %s132, 4
          %s134 = scalar_lea.vmem %s0, %s133
          // Predicated region
          $region21: #{_lambda_.3} parent=19 // pred_check
            _
          $region22: #{_lambda_.3} parent=19 // pred_check_branch
            %136 = sbr.rel (0) target = $region24
          $region23: #{_lambda_.3} parent=19 // pred_region
            // Predicated region
            $region25: #{_lambda_.3} parent=23 // pred_check
              _
            $region26: #{_lambda_.3} parent=23 // pred_check_branch
              %138 = sbr.rel target = $region28
            $region27: #{_lambda_.3} parent=23 // pred_region
              // Predicated region
              $region40: #{_lambda_.3} parent=27 // pred_check
                _
              $region41: #{_lambda_.3} parent=27 // pred_check_branch
                %439 = sbr.rel (0) target = $region43
              $region42: #{_lambda_.3} parent=27 // pred_region
                loop: start=0, step=1, limit=1
                $region44: #{_lambda_.3} parent=42 // loop_pre_header
                  _
                $region45: #{_lambda_.3} parent=42 // loop_header
                  %s441 = sphi 0, %s445
                  %p442 = scmp.ge.s32.totalorder %s441, 1
                  %s446 = sphi %s134, %s134
                  %s447 = sphi %s129, %s129
                $region46: #{_lambda_.3} parent=42 // loop_header_branch
                  %444 = sbr.rel (%p442) target = $region50
                $region47: #{_lambda_.3} parent=42 // loop_body
                  _
                $region48: #{_lambda_.3} parent=42 // loop_footer
                  %s445 = sadd.s32 1, %s441
                $region49: #{_lambda_.3} parent=42 // loop_footer_branch
                  %440 = sbr.rel target = $region45
                $region50: #{_lambda_.3} parent=42 // loop_exit
                  _
                loop: start=0, step=1, limit=1
                $region51: #{_lambda_.3} parent=42 // loop_pre_header
                  _
                $region52: #{_lambda_.3} parent=42 // loop_header
                  %s450 = sphi 0, %s454
                  %p451 = scmp.ge.s32.totalorder %s450, 1
                  %s455 = sphi %s134, %s134
                  %s456 = sphi %s129, %s129
                $region53: #{_lambda_.3} parent=42 // loop_header_branch
                  %453 = sbr.rel (%p451) target = $region57
                $region54: #{_lambda_.3} parent=42 // loop_body
                  %v457 = vld [vmem:[%s455] sm:$0xf]
                  %458 = vst [vmem:[%s456] sm:$0xf] %v457
                  %v459 = vld [vmem:[%s455 + $0x4] sm:$0xf]
                  %460 = vst [vmem:[%s456 + $0x4] sm:$0xf] %v459
                  %v461 = vld [vmem:[%s455 + $0x8] sm:$0xf]
                  %462 = vst [vmem:[%s456 + $0x8] sm:$0xf] %v461
                  %v463 = vld [vmem:[%s455 + $0xc] sm:$0xf]
                  %464 = vst [vmem:[%s456 + $0xc] sm:$0xf] %v463
                  %v465 = vld [vmem:[%s455 + $0x10] sm:$0xf]
                  %466 = vst [vmem:[%s456 + $0x10] sm:$0xf] %v465
                  %v467 = vld [vmem:[%s455 + $0x14] sm:$0xf]
                  %468 = vst [vmem:[%s456 + $0x14] sm:$0xf] %v467
                  %v469 = vld [vmem:[%s455 + $0x18] sm:$0xf]
                  %470 = vst [vmem:[%s456 + $0x18] sm:$0xf] %v469
                  %v471 = vld [vmem:[%s455 + $0x1c] sm:$0xf]
                  %472 = vst [vmem:[%s456 + $0x1c] sm:$0xf] %v471
                  %v473 = vld [vmem:[%s455 + $0x20] sm:$0xf]
                  %474 = vst [vmem:[%s456 + $0x20] sm:$0xf] %v473
                  %v475 = vld [vmem:[%s455 + $0x24] sm:$0xf]
                  %476 = vst [vmem:[%s456 + $0x24] sm:$0xf] %v475
                  %v477 = vld [vmem:[%s455 + $0x28] sm:$0xf]
                  %478 = vst [vmem:[%s456 + $0x28] sm:$0xf] %v477
                  %v479 = vld [vmem:[%s455 + $0x2c] sm:$0xf]
                  %480 = vst [vmem:[%s456 + $0x2c] sm:$0xf] %v479
                  %v481 = vld [vmem:[%s455 + $0x30] sm:$0xf]
                  %482 = vst [vmem:[%s456 + $0x30] sm:$0xf] %v481
                  %v483 = vld [vmem:[%s455 + $0x34] sm:$0xf]
                  %484 = vst [vmem:[%s456 + $0x34] sm:$0xf] %v483
                  %v485 = vld [vmem:[%s455 + $0x38] sm:$0xf]
                  %486 = vst [vmem:[%s456 + $0x38] sm:$0xf] %v485
                  %v487 = vld [vmem:[%s455 + $0x3c] sm:$0xf]
                  %488 = vst [vmem:[%s456 + $0x3c] sm:$0xf] %v487
                  %v489 = vld [vmem:[%s455 + $0x80] sm:$0xf]
                  %490 = vst [vmem:[%s456 + $0x40] sm:$0xf] %v489
                  %v491 = vld [vmem:[%s455 + $0x84] sm:$0xf]
                  %492 = vst [vmem:[%s456 + $0x44] sm:$0xf] %v491
                  %v493 = vld [vmem:[%s455 + $0x88] sm:$0xf]
                  %494 = vst [vmem:[%s456 + $0x48] sm:$0xf] %v493
                  %v495 = vld [vmem:[%s455 + $0x8c] sm:$0xf]
                  %496 = vst [vmem:[%s456 + $0x4c] sm:$0xf] %v495
                  %v497 = vld [vmem:[%s455 + $0x90] sm:$0xf]
                  %498 = vst [vmem:[%s456 + $0x50] sm:$0xf] %v497
                  %v499 = vld [vmem:[%s455 + $0x94] sm:$0xf]
                  %500 = vst [vmem:[%s456 + $0x54] sm:$0xf] %v499
                  %v501 = vld [vmem:[%s455 + $0x98] sm:$0xf]
                  %502 = vst [vmem:[%s456 + $0x58] sm:$0xf] %v501
                  %v503 = vld [vmem:[%s455 + $0x9c] sm:$0xf]
                  %504 = vst [vmem:[%s456 + $0x5c] sm:$0xf] %v503
                  %v505 = vld [vmem:[%s455 + $0xa0] sm:$0xf]
                  %506 = vst [vmem:[%s456 + $0x60] sm:$0xf] %v505
                  %v507 = vld [vmem:[%s455 + $0xa4] sm:$0xf]
                  %508 = vst [vmem:[%s456 + $0x64] sm:$0xf] %v507
                  %v509 = vld [vmem:[%s455 + $0xa8] sm:$0xf]
                  %510 = vst [vmem:[%s456 + $0x68] sm:$0xf] %v509
                  %v511 = vld [vmem:[%s455 + $0xac] sm:$0xf]
                  %512 = vst [vmem:[%s456 + $0x6c] sm:$0xf] %v511
                  %v513 = vld [vmem:[%s455 + $0xb0] sm:$0xf]
                  %514 = vst [vmem:[%s456 + $0x70] sm:$0xf] %v513
                  %v515 = vld [vmem:[%s455 + $0xb4] sm:$0xf]
                  %516 = vst [vmem:[%s456 + $0x74] sm:$0xf] %v515
                  %v517 = vld [vmem:[%s455 + $0xb8] sm:$0xf]
                  %518 = vst [vmem:[%s456 + $0x78] sm:$0xf] %v517
                  %v519 = vld [vmem:[%s455 + $0xbc] sm:$0xf]
                  %520 = vst [vmem:[%s456 + $0x7c] sm:$0xf] %v519
                  %v521 = vld [vmem:[%s455 + $0x100] sm:$0xf]
                  %522 = vst [vmem:[%s456 + $0x80] sm:$0xf] %v521
                  %v523 = vld [vmem:[%s455 + $0x104] sm:$0xf]
                  %524 = vst [vmem:[%s456 + $0x84] sm:$0xf] %v523
                  %v525 = vld [vmem:[%s455 + $0x108] sm:$0xf]
                  %526 = vst [vmem:[%s456 + $0x88] sm:$0xf] %v525
                  %v527 = vld [vmem:[%s455 + $0x10c] sm:$0xf]
                  %528 = vst [vmem:[%s456 + $0x8c] sm:$0xf] %v527
                  %v529 = vld [vmem:[%s455 + $0x110] sm:$0xf]
                  %530 = vst [vmem:[%s456 + $0x90] sm:$0xf] %v529
                  %v531 = vld [vmem:[%s455 + $0x114] sm:$0xf]
                  %532 = vst [vmem:[%s456 + $0x94] sm:$0xf] %v531
                  %v533 = vld [vmem:[%s455 + $0x118] sm:$0xf]
                  %534 = vst [vmem:[%s456 + $0x98] sm:$0xf] %v533
                  %v535 = vld [vmem:[%s455 + $0x11c] sm:$0xf]
                  %536 = vst [vmem:[%s456 + $0x9c] sm:$0xf] %v535
                  %v537 = vld [vmem:[%s455 + $0x120] sm:$0xf]
                  %538 = vst [vmem:[%s456 + $0xa0] sm:$0xf] %v537
                  %v539 = vld [vmem:[%s455 + $0x124] sm:$0xf]
                  %540 = vst [vmem:[%s456 + $0xa4] sm:$0xf] %v539
                  %v541 = vld [vmem:[%s455 + $0x128] sm:$0xf]
                  %542 = vst [vmem:[%s456 + $0xa8] sm:$0xf] %v541
                  %v543 = vld [vmem:[%s455 + $0x12c] sm:$0xf]
                  %544 = vst [vmem:[%s456 + $0xac] sm:$0xf] %v543
                  %v545 = vld [vmem:[%s455 + $0x130] sm:$0xf]
                  %546 = vst [vmem:[%s456 + $0xb0] sm:$0xf] %v545
                  %v547 = vld [vmem:[%s455 + $0x134] sm:$0xf]
                  %548 = vst [vmem:[%s456 + $0xb4] sm:$0xf] %v547
                  %v549 = vld [vmem:[%s455 + $0x138] sm:$0xf]
                  %550 = vst [vmem:[%s456 + $0xb8] sm:$0xf] %v549
                  %v551 = vld [vmem:[%s455 + $0x13c] sm:$0xf]
                  %552 = vst [vmem:[%s456 + $0xbc] sm:$0xf] %v551
                  %v553 = vld [vmem:[%s455 + $0x180] sm:$0xf]
                  %554 = vst [vmem:[%s456 + $0xc0] sm:$0xf] %v553
                  %v555 = vld [vmem:[%s455 + $0x184] sm:$0xf]
                  %556 = vst [vmem:[%s456 + $0xc4] sm:$0xf] %v555
                  %v557 = vld [vmem:[%s455 + $0x188] sm:$0xf]
                  %558 = vst [vmem:[%s456 + $0xc8] sm:$0xf] %v557
                  %v559 = vld [vmem:[%s455 + $0x18c] sm:$0xf]
                  %560 = vst [vmem:[%s456 + $0xcc] sm:$0xf] %v559
                  %v561 = vld [vmem:[%s455 + $0x190] sm:$0xf]
                  %562 = vst [vmem:[%s456 + $0xd0] sm:$0xf] %v561
                  %v563 = vld [vmem:[%s455 + $0x194] sm:$0xf]
                  %564 = vst [vmem:[%s456 + $0xd4] sm:$0xf] %v563
                  %v565 = vld [vmem:[%s455 + $0x198] sm:$0xf]
                  %566 = vst [vmem:[%s456 + $0xd8] sm:$0xf] %v565
                  %v567 = vld [vmem:[%s455 + $0x19c] sm:$0xf]
                  %568 = vst [vmem:[%s456 + $0xdc] sm:$0xf] %v567
                  %v569 = vld [vmem:[%s455 + $0x1a0] sm:$0xf]
                  %570 = vst [vmem:[%s456 + $0xe0] sm:$0xf] %v569
                  %v571 = vld [vmem:[%s455 + $0x1a4] sm:$0xf]
                  %572 = vst [vmem:[%s456 + $0xe4] sm:$0xf] %v571
                  %v573 = vld [vmem:[%s455 + $0x1a8] sm:$0xf]
                  %574 = vst [vmem:[%s456 + $0xe8] sm:$0xf] %v573
                  %v575 = vld [vmem:[%s455 + $0x1ac] sm:$0xf]
                  %576 = vst [vmem:[%s456 + $0xec] sm:$0xf] %v575
                  %v577 = vld [vmem:[%s455 + $0x1b0] sm:$0xf]
                  %578 = vst [vmem:[%s456 + $0xf0] sm:$0xf] %v577
                  %v579 = vld [vmem:[%s455 + $0x1b4] sm:$0xf]
                  %580 = vst [vmem:[%s456 + $0xf4] sm:$0xf] %v579
                  %v581 = vld [vmem:[%s455 + $0x1b8] sm:$0xf]
                  %582 = vst [vmem:[%s456 + $0xf8] sm:$0xf] %v581
                  %v583 = vld [vmem:[%s455 + $0x1bc] sm:$0xf]
                  %584 = vst [vmem:[%s456 + $0xfc] sm:$0xf] %v583
                  %v585 = vld [vmem:[%s455 + $0x200] sm:$0xf]
                  %586 = vst [vmem:[%s456 + $0x100] sm:$0xf] %v585
                  %v587 = vld [vmem:[%s455 + $0x204] sm:$0xf]
                  %588 = vst [vmem:[%s456 + $0x104] sm:$0xf] %v587
                  %v589 = vld [vmem:[%s455 + $0x208] sm:$0xf]
                  %590 = vst [vmem:[%s456 + $0x108] sm:$0xf] %v589
                  %v591 = vld [vmem:[%s455 + $0x20c] sm:$0xf]
                  %592 = vst [vmem:[%s456 + $0x10c] sm:$0xf] %v591
                  %v593 = vld [vmem:[%s455 + $0x210] sm:$0xf]
                  %594 = vst [vmem:[%s456 + $0x110] sm:$0xf] %v593
                  %v595 = vld [vmem:[%s455 + $0x214] sm:$0xf]
                  %596 = vst [vmem:[%s456 + $0x114] sm:$0xf] %v595
                  %v597 = vld [vmem:[%s455 + $0x218] sm:$0xf]
                  %598 = vst [vmem:[%s456 + $0x118] sm:$0xf] %v597
                  %v599 = vld [vmem:[%s455 + $0x21c] sm:$0xf]
                  %600 = vst [vmem:[%s456 + $0x11c] sm:$0xf] %v599
                  %v601 = vld [vmem:[%s455 + $0x220] sm:$0xf]
                  %602 = vst [vmem:[%s456 + $0x120] sm:$0xf] %v601
                  %v603 = vld [vmem:[%s455 + $0x224] sm:$0xf]
                  %604 = vst [vmem:[%s456 + $0x124] sm:$0xf] %v603
                  %v605 = vld [vmem:[%s455 + $0x228] sm:$0xf]
                  %606 = vst [vmem:[%s456 + $0x128] sm:$0xf] %v605
                  %v607 = vld [vmem:[%s455 + $0x22c] sm:$0xf]
                  %608 = vst [vmem:[%s456 + $0x12c] sm:$0xf] %v607
                  %v609 = vld [vmem:[%s455 + $0x230] sm:$0xf]
                  %610 = vst [vmem:[%s456 + $0x130] sm:$0xf] %v609
                  %v611 = vld [vmem:[%s455 + $0x234] sm:$0xf]
                  %612 = vst [vmem:[%s456 + $0x134] sm:$0xf] %v611
                  %v613 = vld [vmem:[%s455 + $0x238] sm:$0xf]
                  %614 = vst [vmem:[%s456 + $0x138] sm:$0xf] %v613
                  %v615 = vld [vmem:[%s455 + $0x23c] sm:$0xf]
                  %616 = vst [vmem:[%s456 + $0x13c] sm:$0xf] %v615
                  %v617 = vld [vmem:[%s455 + $0x280] sm:$0xf]
                  %618 = vst [vmem:[%s456 + $0x140] sm:$0xf] %v617
                  %v619 = vld [vmem:[%s455 + $0x284] sm:$0xf]
                  %620 = vst [vmem:[%s456 + $0x144] sm:$0xf] %v619
                  %v621 = vld [vmem:[%s455 + $0x288] sm:$0xf]
                  %622 = vst [vmem:[%s456 + $0x148] sm:$0xf] %v621
                  %v623 = vld [vmem:[%s455 + $0x28c] sm:$0xf]
                  %624 = vst [vmem:[%s456 + $0x14c] sm:$0xf] %v623
                  %v625 = vld [vmem:[%s455 + $0x290] sm:$0xf]
                  %626 = vst [vmem:[%s456 + $0x150] sm:$0xf] %v625
                  %v627 = vld [vmem:[%s455 + $0x294] sm:$0xf]
                  %628 = vst [vmem:[%s456 + $0x154] sm:$0xf] %v627
                  %v629 = vld [vmem:[%s455 + $0x298] sm:$0xf]
                  %630 = vst [vmem:[%s456 + $0x158] sm:$0xf] %v629
                  %v631 = vld [vmem:[%s455 + $0x29c] sm:$0xf]
                  %632 = vst [vmem:[%s456 + $0x15c] sm:$0xf] %v631
                  %v633 = vld [vmem:[%s455 + $0x2a0] sm:$0xf]
                  %634 = vst [vmem:[%s456 + $0x160] sm:$0xf] %v633
                  %v635 = vld [vmem:[%s455 + $0x2a4] sm:$0xf]
                  %636 = vst [vmem:[%s456 + $0x164] sm:$0xf] %v635
                  %v637 = vld [vmem:[%s455 + $0x2a8] sm:$0xf]
                  %638 = vst [vmem:[%s456 + $0x168] sm:$0xf] %v637
                  %v639 = vld [vmem:[%s455 + $0x2ac] sm:$0xf]
                  %640 = vst [vmem:[%s456 + $0x16c] sm:$0xf] %v639
                  %v641 = vld [vmem:[%s455 + $0x2b0] sm:$0xf]
                  %642 = vst [vmem:[%s456 + $0x170] sm:$0xf] %v641
                  %v643 = vld [vmem:[%s455 + $0x2b4] sm:$0xf]
                  %644 = vst [vmem:[%s456 + $0x174] sm:$0xf] %v643
                  %v645 = vld [vmem:[%s455 + $0x2b8] sm:$0xf]
                  %646 = vst [vmem:[%s456 + $0x178] sm:$0xf] %v645
                  %v647 = vld [vmem:[%s455 + $0x2bc] sm:$0xf]
                  %648 = vst [vmem:[%s456 + $0x17c] sm:$0xf] %v647
                  %v649 = vld [vmem:[%s455 + $0x300] sm:$0xf]
                  %650 = vst [vmem:[%s456 + $0x180] sm:$0xf] %v649
                  %v651 = vld [vmem:[%s455 + $0x304] sm:$0xf]
                  %652 = vst [vmem:[%s456 + $0x184] sm:$0xf] %v651
                  %v653 = vld [vmem:[%s455 + $0x308] sm:$0xf]
                  %654 = vst [vmem:[%s456 + $0x188] sm:$0xf] %v653
                  %v655 = vld [vmem:[%s455 + $0x30c] sm:$0xf]
                  %656 = vst [vmem:[%s456 + $0x18c] sm:$0xf] %v655
                  %v657 = vld [vmem:[%s455 + $0x310] sm:$0xf]
                  %658 = vst [vmem:[%s456 + $0x190] sm:$0xf] %v657
                  %v659 = vld [vmem:[%s455 + $0x314] sm:$0xf]
                  %660 = vst [vmem:[%s456 + $0x194] sm:$0xf] %v659
                  %v661 = vld [vmem:[%s455 + $0x318] sm:$0xf]
                  %662 = vst [vmem:[%s456 + $0x198] sm:$0xf] %v661
                  %v663 = vld [vmem:[%s455 + $0x31c] sm:$0xf]
                  %664 = vst [vmem:[%s456 + $0x19c] sm:$0xf] %v663
                  %v665 = vld [vmem:[%s455 + $0x320] sm:$0xf]
                  %666 = vst [vmem:[%s456 + $0x1a0] sm:$0xf] %v665
                  %v667 = vld [vmem:[%s455 + $0x324] sm:$0xf]
                  %668 = vst [vmem:[%s456 + $0x1a4] sm:$0xf] %v667
                  %v669 = vld [vmem:[%s455 + $0x328] sm:$0xf]
                  %670 = vst [vmem:[%s456 + $0x1a8] sm:$0xf] %v669
                  %v671 = vld [vmem:[%s455 + $0x32c] sm:$0xf]
                  %672 = vst [vmem:[%s456 + $0x1ac] sm:$0xf] %v671
                  %v673 = vld [vmem:[%s455 + $0x330] sm:$0xf]
                  %674 = vst [vmem:[%s456 + $0x1b0] sm:$0xf] %v673
                  %v675 = vld [vmem:[%s455 + $0x334] sm:$0xf]
                  %676 = vst [vmem:[%s456 + $0x1b4] sm:$0xf] %v675
                  %v677 = vld [vmem:[%s455 + $0x338] sm:$0xf]
                  %678 = vst [vmem:[%s456 + $0x1b8] sm:$0xf] %v677
                  %v679 = vld [vmem:[%s455 + $0x33c] sm:$0xf]
                  %680 = vst [vmem:[%s456 + $0x1bc] sm:$0xf] %v679
                  %v681 = vld [vmem:[%s455 + $0x380] sm:$0xf]
                  %682 = vst [vmem:[%s456 + $0x1c0] sm:$0xf] %v681
                  %v683 = vld [vmem:[%s455 + $0x384] sm:$0xf]
                  %684 = vst [vmem:[%s456 + $0x1c4] sm:$0xf] %v683
                  %v685 = vld [vmem:[%s455 + $0x388] sm:$0xf]
                  %686 = vst [vmem:[%s456 + $0x1c8] sm:$0xf] %v685
                  %v687 = vld [vmem:[%s455 + $0x38c] sm:$0xf]
                  %688 = vst [vmem:[%s456 + $0x1cc] sm:$0xf] %v687
                  %v689 = vld [vmem:[%s455 + $0x390] sm:$0xf]
                  %690 = vst [vmem:[%s456 + $0x1d0] sm:$0xf] %v689
                  %v691 = vld [vmem:[%s455 + $0x394] sm:$0xf]
                  %692 = vst [vmem:[%s456 + $0x1d4] sm:$0xf] %v691
                  %v693 = vld [vmem:[%s455 + $0x398] sm:$0xf]
                  %694 = vst [vmem:[%s456 + $0x1d8] sm:$0xf] %v693
                  %v695 = vld [vmem:[%s455 + $0x39c] sm:$0xf]
                  %696 = vst [vmem:[%s456 + $0x1dc] sm:$0xf] %v695
                  %v697 = vld [vmem:[%s455 + $0x3a0] sm:$0xf]
                  %698 = vst [vmem:[%s456 + $0x1e0] sm:$0xf] %v697
                  %v699 = vld [vmem:[%s455 + $0x3a4] sm:$0xf]
                  %700 = vst [vmem:[%s456 + $0x1e4] sm:$0xf] %v699
                  %v701 = vld [vmem:[%s455 + $0x3a8] sm:$0xf]
                  %702 = vst [vmem:[%s456 + $0x1e8] sm:$0xf] %v701
                  %v703 = vld [vmem:[%s455 + $0x3ac] sm:$0xf]
                  %704 = vst [vmem:[%s456 + $0x1ec] sm:$0xf] %v703
                  %v705 = vld [vmem:[%s455 + $0x3b0] sm:$0xf]
                  %706 = vst [vmem:[%s456 + $0x1f0] sm:$0xf] %v705
                  %v707 = vld [vmem:[%s455 + $0x3b4] sm:$0xf]
                  %708 = vst [vmem:[%s456 + $0x1f4] sm:$0xf] %v707
                  %v709 = vld [vmem:[%s455 + $0x3b8] sm:$0xf]
                  %710 = vst [vmem:[%s456 + $0x1f8] sm:$0xf] %v709
                  %v711 = vld [vmem:[%s455 + $0x3bc] sm:$0xf]
                  %712 = vst [vmem:[%s456 + $0x1fc] sm:$0xf] %v711
                  %v713 = vld [vmem:[%s455 + $0x400] sm:$0xf]
                  %714 = vst [vmem:[%s456 + $0x200] sm:$0xf] %v713
                  %v715 = vld [vmem:[%s455 + $0x404] sm:$0xf]
                  %716 = vst [vmem:[%s456 + $0x204] sm:$0xf] %v715
                  %v717 = vld [vmem:[%s455 + $0x408] sm:$0xf]
                  %718 = vst [vmem:[%s456 + $0x208] sm:$0xf] %v717
                  %v719 = vld [vmem:[%s455 + $0x40c] sm:$0xf]
                  %720 = vst [vmem:[%s456 + $0x20c] sm:$0xf] %v719
                  %v721 = vld [vmem:[%s455 + $0x410] sm:$0xf]
                  %722 = vst [vmem:[%s456 + $0x210] sm:$0xf] %v721
                  %v723 = vld [vmem:[%s455 + $0x414] sm:$0xf]
                  %724 = vst [vmem:[%s456 + $0x214] sm:$0xf] %v723
                  %v725 = vld [vmem:[%s455 + $0x418] sm:$0xf]
                  %726 = vst [vmem:[%s456 + $0x218] sm:$0xf] %v725
                  %v727 = vld [vmem:[%s455 + $0x41c] sm:$0xf]
                  %728 = vst [vmem:[%s456 + $0x21c] sm:$0xf] %v727
                  %v729 = vld [vmem:[%s455 + $0x420] sm:$0xf]
                  %730 = vst [vmem:[%s456 + $0x220] sm:$0xf] %v729
                  %v731 = vld [vmem:[%s455 + $0x424] sm:$0xf]
                  %732 = vst [vmem:[%s456 + $0x224] sm:$0xf] %v731
                  %v733 = vld [vmem:[%s455 + $0x428] sm:$0xf]
                  %734 = vst [vmem:[%s456 + $0x228] sm:$0xf] %v733
                  %v735 = vld [vmem:[%s455 + $0x42c] sm:$0xf]
                  %736 = vst [vmem:[%s456 + $0x22c] sm:$0xf] %v735
                  %v737 = vld [vmem:[%s455 + $0x430] sm:$0xf]
                  %738 = vst [vmem:[%s456 + $0x230] sm:$0xf] %v737
                  %v739 = vld [vmem:[%s455 + $0x434] sm:$0xf]
                  %740 = vst [vmem:[%s456 + $0x234] sm:$0xf] %v739
                  %v741 = vld [vmem:[%s455 + $0x438] sm:$0xf]
                  %742 = vst [vmem:[%s456 + $0x238] sm:$0xf] %v741
                  %v743 = vld [vmem:[%s455 + $0x43c] sm:$0xf]
                  %744 = vst [vmem:[%s456 + $0x23c] sm:$0xf] %v743
                $region55: #{_lambda_.3} parent=42 // loop_footer
                  %s454 = sadd.s32 1, %s450
                $region56: #{_lambda_.3} parent=42 // loop_footer_branch
                  %449 = sbr.rel target = $region52
                $region57: #{_lambda_.3} parent=42 // loop_exit
                  _
              $region43: #{_lambda_.3} parent=27 // pred_fallthru
                _
            $region28: #{_lambda_.3} parent=23 // pred_fallthru
              _
            // Predicated region
            $region29: #{_lambda_.3} parent=23 // pred_check
              _
            $region30: #{_lambda_.3} parent=23 // pred_check_branch
              %140 = sbr.rel (0) target = $region32
            $region31: #{_lambda_.3} parent=23 // pred_region
              loop: start=0, step=1, limit=1
              $region33: #{_lambda_.3} parent=31 // loop_pre_header
                _
              $region34: #{_lambda_.3} parent=31 // loop_header
                %s143 = sphi 0, %s147
                %p144 = scmp.ge.s32.totalorder %s143, 1
                %s148 = sphi %s134, %s134
                %s149 = sphi %s129, %s129
              $region35: #{_lambda_.3} parent=31 // loop_header_branch
                %146 = sbr.rel (%p144) target = $region39
              $region36: #{_lambda_.3} parent=31 // loop_body
                %v150 = vld [vmem:[%s148] sm:$0xf]
                %151 = vst [vmem:[%s149] sm:$0xf] %v150
                %v152 = vld [vmem:[%s148 + $0x4] sm:$0xf]
                %153 = vst [vmem:[%s149 + $0x4] sm:$0xf] %v152
                %v154 = vld [vmem:[%s148 + $0x8] sm:$0xf]
                %155 = vst [vmem:[%s149 + $0x8] sm:$0xf] %v154
                %v156 = vld [vmem:[%s148 + $0xc] sm:$0xf]
                %157 = vst [vmem:[%s149 + $0xc] sm:$0xf] %v156
                %v158 = vld [vmem:[%s148 + $0x10] sm:$0xf]
                %159 = vst [vmem:[%s149 + $0x10] sm:$0xf] %v158
                %v160 = vld [vmem:[%s148 + $0x14] sm:$0xf]
                %161 = vst [vmem:[%s149 + $0x14] sm:$0xf] %v160
                %v162 = vld [vmem:[%s148 + $0x18] sm:$0xf]
                %163 = vst [vmem:[%s149 + $0x18] sm:$0xf] %v162
                %v164 = vld [vmem:[%s148 + $0x1c] sm:$0xf]
                %165 = vst [vmem:[%s149 + $0x1c] sm:$0xf] %v164
                %v166 = vld [vmem:[%s148 + $0x20] sm:$0xf]
                %167 = vst [vmem:[%s149 + $0x20] sm:$0xf] %v166
                %v168 = vld [vmem:[%s148 + $0x24] sm:$0xf]
                %169 = vst [vmem:[%s149 + $0x24] sm:$0xf] %v168
                %v170 = vld [vmem:[%s148 + $0x28] sm:$0xf]
                %171 = vst [vmem:[%s149 + $0x28] sm:$0xf] %v170
                %v172 = vld [vmem:[%s148 + $0x2c] sm:$0xf]
                %173 = vst [vmem:[%s149 + $0x2c] sm:$0xf] %v172
                %v174 = vld [vmem:[%s148 + $0x30] sm:$0xf]
                %175 = vst [vmem:[%s149 + $0x30] sm:$0xf] %v174
                %v176 = vld [vmem:[%s148 + $0x34] sm:$0xf]
                %177 = vst [vmem:[%s149 + $0x34] sm:$0xf] %v176
                %v178 = vld [vmem:[%s148 + $0x38] sm:$0xf]
                %179 = vst [vmem:[%s149 + $0x38] sm:$0xf] %v178
                %v180 = vld [vmem:[%s148 + $0x3c] sm:$0xf]
                %181 = vst [vmem:[%s149 + $0x3c] sm:$0xf] %v180
                %v182 = vld [vmem:[%s148 + $0x80] sm:$0xf]
                %183 = vst [vmem:[%s149 + $0x40] sm:$0xf] %v182
                %v184 = vld [vmem:[%s148 + $0x84] sm:$0xf]
                %185 = vst [vmem:[%s149 + $0x44] sm:$0xf] %v184
                %v186 = vld [vmem:[%s148 + $0x88] sm:$0xf]
                %187 = vst [vmem:[%s149 + $0x48] sm:$0xf] %v186
                %v188 = vld [vmem:[%s148 + $0x8c] sm:$0xf]
                %189 = vst [vmem:[%s149 + $0x4c] sm:$0xf] %v188
                %v190 = vld [vmem:[%s148 + $0x90] sm:$0xf]
                %191 = vst [vmem:[%s149 + $0x50] sm:$0xf] %v190
                %v192 = vld [vmem:[%s148 + $0x94] sm:$0xf]
                %193 = vst [vmem:[%s149 + $0x54] sm:$0xf] %v192
                %v194 = vld [vmem:[%s148 + $0x98] sm:$0xf]
                %195 = vst [vmem:[%s149 + $0x58] sm:$0xf] %v194
                %v196 = vld [vmem:[%s148 + $0x9c] sm:$0xf]
                %197 = vst [vmem:[%s149 + $0x5c] sm:$0xf] %v196
                %v198 = vld [vmem:[%s148 + $0xa0] sm:$0xf]
                %199 = vst [vmem:[%s149 + $0x60] sm:$0xf] %v198
                %v200 = vld [vmem:[%s148 + $0xa4] sm:$0xf]
                %201 = vst [vmem:[%s149 + $0x64] sm:$0xf] %v200
                %v202 = vld [vmem:[%s148 + $0xa8] sm:$0xf]
                %203 = vst [vmem:[%s149 + $0x68] sm:$0xf] %v202
                %v204 = vld [vmem:[%s148 + $0xac] sm:$0xf]
                %205 = vst [vmem:[%s149 + $0x6c] sm:$0xf] %v204
                %v206 = vld [vmem:[%s148 + $0xb0] sm:$0xf]
                %207 = vst [vmem:[%s149 + $0x70] sm:$0xf] %v206
                %v208 = vld [vmem:[%s148 + $0xb4] sm:$0xf]
                %209 = vst [vmem:[%s149 + $0x74] sm:$0xf] %v208
                %v210 = vld [vmem:[%s148 + $0xb8] sm:$0xf]
                %211 = vst [vmem:[%s149 + $0x78] sm:$0xf] %v210
                %v212 = vld [vmem:[%s148 + $0xbc] sm:$0xf]
                %213 = vst [vmem:[%s149 + $0x7c] sm:$0xf] %v212
                %v214 = vld [vmem:[%s148 + $0x100] sm:$0xf]
                %215 = vst [vmem:[%s149 + $0x80] sm:$0xf] %v214
                %v216 = vld [vmem:[%s148 + $0x104] sm:$0xf]
                %217 = vst [vmem:[%s149 + $0x84] sm:$0xf] %v216
                %v218 = vld [vmem:[%s148 + $0x108] sm:$0xf]
                %219 = vst [vmem:[%s149 + $0x88] sm:$0xf] %v218
                %v220 = vld [vmem:[%s148 + $0x10c] sm:$0xf]
                %221 = vst [vmem:[%s149 + $0x8c] sm:$0xf] %v220
                %v222 = vld [vmem:[%s148 + $0x110] sm:$0xf]
                %223 = vst [vmem:[%s149 + $0x90] sm:$0xf] %v222
                %v224 = vld [vmem:[%s148 + $0x114] sm:$0xf]
                %225 = vst [vmem:[%s149 + $0x94] sm:$0xf] %v224
                %v226 = vld [vmem:[%s148 + $0x118] sm:$0xf]
                %227 = vst [vmem:[%s149 + $0x98] sm:$0xf] %v226
                %v228 = vld [vmem:[%s148 + $0x11c] sm:$0xf]
                %229 = vst [vmem:[%s149 + $0x9c] sm:$0xf] %v228
                %v230 = vld [vmem:[%s148 + $0x120] sm:$0xf]
                %231 = vst [vmem:[%s149 + $0xa0] sm:$0xf] %v230
                %v232 = vld [vmem:[%s148 + $0x124] sm:$0xf]
                %233 = vst [vmem:[%s149 + $0xa4] sm:$0xf] %v232
                %v234 = vld [vmem:[%s148 + $0x128] sm:$0xf]
                %235 = vst [vmem:[%s149 + $0xa8] sm:$0xf] %v234
                %v236 = vld [vmem:[%s148 + $0x12c] sm:$0xf]
                %237 = vst [vmem:[%s149 + $0xac] sm:$0xf] %v236
                %v238 = vld [vmem:[%s148 + $0x130] sm:$0xf]
                %239 = vst [vmem:[%s149 + $0xb0] sm:$0xf] %v238
                %v240 = vld [vmem:[%s148 + $0x134] sm:$0xf]
                %241 = vst [vmem:[%s149 + $0xb4] sm:$0xf] %v240
                %v242 = vld [vmem:[%s148 + $0x138] sm:$0xf]
                %243 = vst [vmem:[%s149 + $0xb8] sm:$0xf] %v242
                %v244 = vld [vmem:[%s148 + $0x13c] sm:$0xf]
                %245 = vst [vmem:[%s149 + $0xbc] sm:$0xf] %v244
                %v246 = vld [vmem:[%s148 + $0x180] sm:$0xf]
                %247 = vst [vmem:[%s149 + $0xc0] sm:$0xf] %v246
                %v248 = vld [vmem:[%s148 + $0x184] sm:$0xf]
                %249 = vst [vmem:[%s149 + $0xc4] sm:$0xf] %v248
                %v250 = vld [vmem:[%s148 + $0x188] sm:$0xf]
                %251 = vst [vmem:[%s149 + $0xc8] sm:$0xf] %v250
                %v252 = vld [vmem:[%s148 + $0x18c] sm:$0xf]
                %253 = vst [vmem:[%s149 + $0xcc] sm:$0xf] %v252
                %v254 = vld [vmem:[%s148 + $0x190] sm:$0xf]
                %255 = vst [vmem:[%s149 + $0xd0] sm:$0xf] %v254
                %v256 = vld [vmem:[%s148 + $0x194] sm:$0xf]
                %257 = vst [vmem:[%s149 + $0xd4] sm:$0xf] %v256
                %v258 = vld [vmem:[%s148 + $0x198] sm:$0xf]
                %259 = vst [vmem:[%s149 + $0xd8] sm:$0xf] %v258
                %v260 = vld [vmem:[%s148 + $0x19c] sm:$0xf]
                %261 = vst [vmem:[%s149 + $0xdc] sm:$0xf] %v260
                %v262 = vld [vmem:[%s148 + $0x1a0] sm:$0xf]
                %263 = vst [vmem:[%s149 + $0xe0] sm:$0xf] %v262
                %v264 = vld [vmem:[%s148 + $0x1a4] sm:$0xf]
                %265 = vst [vmem:[%s149 + $0xe4] sm:$0xf] %v264
                %v266 = vld [vmem:[%s148 + $0x1a8] sm:$0xf]
                %267 = vst [vmem:[%s149 + $0xe8] sm:$0xf] %v266
                %v268 = vld [vmem:[%s148 + $0x1ac] sm:$0xf]
                %269 = vst [vmem:[%s149 + $0xec] sm:$0xf] %v268
                %v270 = vld [vmem:[%s148 + $0x1b0] sm:$0xf]
                %271 = vst [vmem:[%s149 + $0xf0] sm:$0xf] %v270
                %v272 = vld [vmem:[%s148 + $0x1b4] sm:$0xf]
                %273 = vst [vmem:[%s149 + $0xf4] sm:$0xf] %v272
                %v274 = vld [vmem:[%s148 + $0x1b8] sm:$0xf]
                %275 = vst [vmem:[%s149 + $0xf8] sm:$0xf] %v274
                %v276 = vld [vmem:[%s148 + $0x1bc] sm:$0xf]
                %277 = vst [vmem:[%s149 + $0xfc] sm:$0xf] %v276
                %v278 = vld [vmem:[%s148 + $0x200] sm:$0xf]
                %279 = vst [vmem:[%s149 + $0x100] sm:$0xf] %v278
                %v280 = vld [vmem:[%s148 + $0x204] sm:$0xf]
                %281 = vst [vmem:[%s149 + $0x104] sm:$0xf] %v280
                %v282 = vld [vmem:[%s148 + $0x208] sm:$0xf]
                %283 = vst [vmem:[%s149 + $0x108] sm:$0xf] %v282
                %v284 = vld [vmem:[%s148 + $0x20c] sm:$0xf]
                %285 = vst [vmem:[%s149 + $0x10c] sm:$0xf] %v284
                %v286 = vld [vmem:[%s148 + $0x210] sm:$0xf]
                %287 = vst [vmem:[%s149 + $0x110] sm:$0xf] %v286
                %v288 = vld [vmem:[%s148 + $0x214] sm:$0xf]
                %289 = vst [vmem:[%s149 + $0x114] sm:$0xf] %v288
                %v290 = vld [vmem:[%s148 + $0x218] sm:$0xf]
                %291 = vst [vmem:[%s149 + $0x118] sm:$0xf] %v290
                %v292 = vld [vmem:[%s148 + $0x21c] sm:$0xf]
                %293 = vst [vmem:[%s149 + $0x11c] sm:$0xf] %v292
                %v294 = vld [vmem:[%s148 + $0x220] sm:$0xf]
                %295 = vst [vmem:[%s149 + $0x120] sm:$0xf] %v294
                %v296 = vld [vmem:[%s148 + $0x224] sm:$0xf]
                %297 = vst [vmem:[%s149 + $0x124] sm:$0xf] %v296
                %v298 = vld [vmem:[%s148 + $0x228] sm:$0xf]
                %299 = vst [vmem:[%s149 + $0x128] sm:$0xf] %v298
                %v300 = vld [vmem:[%s148 + $0x22c] sm:$0xf]
                %301 = vst [vmem:[%s149 + $0x12c] sm:$0xf] %v300
                %v302 = vld [vmem:[%s148 + $0x230] sm:$0xf]
                %303 = vst [vmem:[%s149 + $0x130] sm:$0xf] %v302
                %v304 = vld [vmem:[%s148 + $0x234] sm:$0xf]
                %305 = vst [vmem:[%s149 + $0x134] sm:$0xf] %v304
                %v306 = vld [vmem:[%s148 + $0x238] sm:$0xf]
                %307 = vst [vmem:[%s149 + $0x138] sm:$0xf] %v306
                %v308 = vld [vmem:[%s148 + $0x23c] sm:$0xf]
                %309 = vst [vmem:[%s149 + $0x13c] sm:$0xf] %v308
                %v310 = vld [vmem:[%s148 + $0x280] sm:$0xf]
                %311 = vst [vmem:[%s149 + $0x140] sm:$0xf] %v310
                %v312 = vld [vmem:[%s148 + $0x284] sm:$0xf]
                %313 = vst [vmem:[%s149 + $0x144] sm:$0xf] %v312
                %v314 = vld [vmem:[%s148 + $0x288] sm:$0xf]
                %315 = vst [vmem:[%s149 + $0x148] sm:$0xf] %v314
                %v316 = vld [vmem:[%s148 + $0x28c] sm:$0xf]
                %317 = vst [vmem:[%s149 + $0x14c] sm:$0xf] %v316
                %v318 = vld [vmem:[%s148 + $0x290] sm:$0xf]
                %319 = vst [vmem:[%s149 + $0x150] sm:$0xf] %v318
                %v320 = vld [vmem:[%s148 + $0x294] sm:$0xf]
                %321 = vst [vmem:[%s149 + $0x154] sm:$0xf] %v320
                %v322 = vld [vmem:[%s148 + $0x298] sm:$0xf]
                %323 = vst [vmem:[%s149 + $0x158] sm:$0xf] %v322
                %v324 = vld [vmem:[%s148 + $0x29c] sm:$0xf]
                %325 = vst [vmem:[%s149 + $0x15c] sm:$0xf] %v324
                %v326 = vld [vmem:[%s148 + $0x2a0] sm:$0xf]
                %327 = vst [vmem:[%s149 + $0x160] sm:$0xf] %v326
                %v328 = vld [vmem:[%s148 + $0x2a4] sm:$0xf]
                %329 = vst [vmem:[%s149 + $0x164] sm:$0xf] %v328
                %v330 = vld [vmem:[%s148 + $0x2a8] sm:$0xf]
                %331 = vst [vmem:[%s149 + $0x168] sm:$0xf] %v330
                %v332 = vld [vmem:[%s148 + $0x2ac] sm:$0xf]
                %333 = vst [vmem:[%s149 + $0x16c] sm:$0xf] %v332
                %v334 = vld [vmem:[%s148 + $0x2b0] sm:$0xf]
                %335 = vst [vmem:[%s149 + $0x170] sm:$0xf] %v334
                %v336 = vld [vmem:[%s148 + $0x2b4] sm:$0xf]
                %337 = vst [vmem:[%s149 + $0x174] sm:$0xf] %v336
                %v338 = vld [vmem:[%s148 + $0x2b8] sm:$0xf]
                %339 = vst [vmem:[%s149 + $0x178] sm:$0xf] %v338
                %v340 = vld [vmem:[%s148 + $0x2bc] sm:$0xf]
                %341 = vst [vmem:[%s149 + $0x17c] sm:$0xf] %v340
                %v342 = vld [vmem:[%s148 + $0x300] sm:$0xf]
                %343 = vst [vmem:[%s149 + $0x180] sm:$0xf] %v342
                %v344 = vld [vmem:[%s148 + $0x304] sm:$0xf]
                %345 = vst [vmem:[%s149 + $0x184] sm:$0xf] %v344
                %v346 = vld [vmem:[%s148 + $0x308] sm:$0xf]
                %347 = vst [vmem:[%s149 + $0x188] sm:$0xf] %v346
                %v348 = vld [vmem:[%s148 + $0x30c] sm:$0xf]
                %349 = vst [vmem:[%s149 + $0x18c] sm:$0xf] %v348
                %v350 = vld [vmem:[%s148 + $0x310] sm:$0xf]
                %351 = vst [vmem:[%s149 + $0x190] sm:$0xf] %v350
                %v352 = vld [vmem:[%s148 + $0x314] sm:$0xf]
                %353 = vst [vmem:[%s149 + $0x194] sm:$0xf] %v352
                %v354 = vld [vmem:[%s148 + $0x318] sm:$0xf]
                %355 = vst [vmem:[%s149 + $0x198] sm:$0xf] %v354
                %v356 = vld [vmem:[%s148 + $0x31c] sm:$0xf]
                %357 = vst [vmem:[%s149 + $0x19c] sm:$0xf] %v356
                %v358 = vld [vmem:[%s148 + $0x320] sm:$0xf]
                %359 = vst [vmem:[%s149 + $0x1a0] sm:$0xf] %v358
                %v360 = vld [vmem:[%s148 + $0x324] sm:$0xf]
                %361 = vst [vmem:[%s149 + $0x1a4] sm:$0xf] %v360
                %v362 = vld [vmem:[%s148 + $0x328] sm:$0xf]
                %363 = vst [vmem:[%s149 + $0x1a8] sm:$0xf] %v362
                %v364 = vld [vmem:[%s148 + $0x32c] sm:$0xf]
                %365 = vst [vmem:[%s149 + $0x1ac] sm:$0xf] %v364
                %v366 = vld [vmem:[%s148 + $0x330] sm:$0xf]
                %367 = vst [vmem:[%s149 + $0x1b0] sm:$0xf] %v366
                %v368 = vld [vmem:[%s148 + $0x334] sm:$0xf]
                %369 = vst [vmem:[%s149 + $0x1b4] sm:$0xf] %v368
                %v370 = vld [vmem:[%s148 + $0x338] sm:$0xf]
                %371 = vst [vmem:[%s149 + $0x1b8] sm:$0xf] %v370
                %v372 = vld [vmem:[%s148 + $0x33c] sm:$0xf]
                %373 = vst [vmem:[%s149 + $0x1bc] sm:$0xf] %v372
                %v374 = vld [vmem:[%s148 + $0x380] sm:$0xf]
                %375 = vst [vmem:[%s149 + $0x1c0] sm:$0xf] %v374
                %v376 = vld [vmem:[%s148 + $0x384] sm:$0xf]
                %377 = vst [vmem:[%s149 + $0x1c4] sm:$0xf] %v376
                %v378 = vld [vmem:[%s148 + $0x388] sm:$0xf]
                %379 = vst [vmem:[%s149 + $0x1c8] sm:$0xf] %v378
                %v380 = vld [vmem:[%s148 + $0x38c] sm:$0xf]
                %381 = vst [vmem:[%s149 + $0x1cc] sm:$0xf] %v380
                %v382 = vld [vmem:[%s148 + $0x390] sm:$0xf]
                %383 = vst [vmem:[%s149 + $0x1d0] sm:$0xf] %v382
                %v384 = vld [vmem:[%s148 + $0x394] sm:$0xf]
                %385 = vst [vmem:[%s149 + $0x1d4] sm:$0xf] %v384
                %v386 = vld [vmem:[%s148 + $0x398] sm:$0xf]
                %387 = vst [vmem:[%s149 + $0x1d8] sm:$0xf] %v386
                %v388 = vld [vmem:[%s148 + $0x39c] sm:$0xf]
                %389 = vst [vmem:[%s149 + $0x1dc] sm:$0xf] %v388
                %v390 = vld [vmem:[%s148 + $0x3a0] sm:$0xf]
                %391 = vst [vmem:[%s149 + $0x1e0] sm:$0xf] %v390
                %v392 = vld [vmem:[%s148 + $0x3a4] sm:$0xf]
                %393 = vst [vmem:[%s149 + $0x1e4] sm:$0xf] %v392
                %v394 = vld [vmem:[%s148 + $0x3a8] sm:$0xf]
                %395 = vst [vmem:[%s149 + $0x1e8] sm:$0xf] %v394
                %v396 = vld [vmem:[%s148 + $0x3ac] sm:$0xf]
                %397 = vst [vmem:[%s149 + $0x1ec] sm:$0xf] %v396
                %v398 = vld [vmem:[%s148 + $0x3b0] sm:$0xf]
                %399 = vst [vmem:[%s149 + $0x1f0] sm:$0xf] %v398
                %v400 = vld [vmem:[%s148 + $0x3b4] sm:$0xf]
                %401 = vst [vmem:[%s149 + $0x1f4] sm:$0xf] %v400
                %v402 = vld [vmem:[%s148 + $0x3b8] sm:$0xf]
                %403 = vst [vmem:[%s149 + $0x1f8] sm:$0xf] %v402
                %v404 = vld [vmem:[%s148 + $0x3bc] sm:$0xf]
                %405 = vst [vmem:[%s149 + $0x1fc] sm:$0xf] %v404
                %v406 = vld [vmem:[%s148 + $0x400] sm:$0xf]
                %407 = vst [vmem:[%s149 + $0x200] sm:$0xf] %v406
                %v408 = vld [vmem:[%s148 + $0x404] sm:$0xf]
                %409 = vst [vmem:[%s149 + $0x204] sm:$0xf] %v408
                %v410 = vld [vmem:[%s148 + $0x408] sm:$0xf]
                %411 = vst [vmem:[%s149 + $0x208] sm:$0xf] %v410
                %v412 = vld [vmem:[%s148 + $0x40c] sm:$0xf]
                %413 = vst [vmem:[%s149 + $0x20c] sm:$0xf] %v412
                %v414 = vld [vmem:[%s148 + $0x410] sm:$0xf]
                %415 = vst [vmem:[%s149 + $0x210] sm:$0xf] %v414
                %v416 = vld [vmem:[%s148 + $0x414] sm:$0xf]
                %417 = vst [vmem:[%s149 + $0x214] sm:$0xf] %v416
                %v418 = vld [vmem:[%s148 + $0x418] sm:$0xf]
                %419 = vst [vmem:[%s149 + $0x218] sm:$0xf] %v418
                %v420 = vld [vmem:[%s148 + $0x41c] sm:$0xf]
                %421 = vst [vmem:[%s149 + $0x21c] sm:$0xf] %v420
                %v422 = vld [vmem:[%s148 + $0x420] sm:$0xf]
                %423 = vst [vmem:[%s149 + $0x220] sm:$0xf] %v422
                %v424 = vld [vmem:[%s148 + $0x424] sm:$0xf]
                %425 = vst [vmem:[%s149 + $0x224] sm:$0xf] %v424
                %v426 = vld [vmem:[%s148 + $0x428] sm:$0xf]
                %427 = vst [vmem:[%s149 + $0x228] sm:$0xf] %v426
                %v428 = vld [vmem:[%s148 + $0x42c] sm:$0xf]
                %429 = vst [vmem:[%s149 + $0x22c] sm:$0xf] %v428
                %v430 = vld [vmem:[%s148 + $0x430] sm:$0xf]
                %431 = vst [vmem:[%s149 + $0x230] sm:$0xf] %v430
                %v432 = vld [vmem:[%s148 + $0x434] sm:$0xf]
                %433 = vst [vmem:[%s149 + $0x234] sm:$0xf] %v432
                %v434 = vld [vmem:[%s148 + $0x438] sm:$0xf]
                %435 = vst [vmem:[%s149 + $0x238] sm:$0xf] %v434
                %v436 = vld [vmem:[%s148 + $0x43c] sm:$0xf]
                %437 = vst [vmem:[%s149 + $0x23c] sm:$0xf] %v436
              $region37: #{_lambda_.3} parent=31 // loop_footer
                %s147 = sadd.s32 1, %s143
              $region38: #{_lambda_.3} parent=31 // loop_footer_branch
                %142 = sbr.rel target = $region34
              $region39: #{_lambda_.3} parent=31 // loop_exit
                _
            $region32: #{_lambda_.3} parent=23 // pred_fallthru
              _
          $region24: #{_lambda_.3} parent=19 // pred_fallthru
            _
          %745 = vnop
        $region20: #{_lambda_.3} parent=15 // pred_fallthru
          _
        // Predicated region
        $region58: #{_lambda_.3} parent=15 // pred_check
          %p746 = pneg %p70
        $region59: #{_lambda_.3} parent=15 // pred_check_branch
          %748 = sbr.rel (%p746) target = $region61
        $region60: #{_lambda_.3} parent=15 // pred_region
          %s749 = sand.u32 %s60, 1
          %s750 = sand.u32 %s60, 1
          %s751 = smul.addr %s750, 32
          %s752 = scalar_lea.vmem [#allocation3], %s751
          %s753 = smul.addr %s15, 8
          %s754 = sadd.s32 %s16, %s753
          %s755 = smul.addr %s754, 8
          %s756 = scalar_lea.vmem %s1, %s755
          // Predicated region
          $region62: #{_lambda_.3} parent=60 // pred_check
            _
          $region63: #{_lambda_.3} parent=60 // pred_check_branch
            %758 = sbr.rel (0) target = $region65
          $region64: #{_lambda_.3} parent=60 // pred_region
            // Predicated region
            $region66: #{_lambda_.3} parent=64 // pred_check
              _
            $region67: #{_lambda_.3} parent=64 // pred_check_branch
              %760 = sbr.rel (0) target = $region69
            $region68: #{_lambda_.3} parent=64 // pred_region
              // Predicated region
              $region81: #{_lambda_.3} parent=68 // pred_check
                _
              $region82: #{_lambda_.3} parent=68 // pred_check_branch
                %781 = sbr.rel (0) target = $region84
              $region83: #{_lambda_.3} parent=68 // pred_region
                loop: start=0, step=1, limit=1
                $region85: #{_lambda_.3} parent=83 // loop_pre_header
                  _
                $region86: #{_lambda_.3} parent=83 // loop_header
                  %s783 = sphi 0, %s787
                  %p784 = scmp.ge.s32.totalorder %s783, 1
                  %s788 = sphi %s756, %s756
                  %s789 = sphi %s752, %s752
                $region87: #{_lambda_.3} parent=83 // loop_header_branch
                  %786 = sbr.rel (%p784) target = $region91
                $region88: #{_lambda_.3} parent=83 // loop_body
                  %v790 = vld [vmem:[%s788] sm:$0xff]
                  %791 = vst [vmem:[%s789] sm:$0xff] %v790
                  %v792 = vld [vmem:[%s788 + $0x10] sm:$0xff]
                  %793 = vst [vmem:[%s789 + $0x8] sm:$0xff] %v792
                  %v794 = vld [vmem:[%s788 + $0x20] sm:$0xff]
                  %795 = vst [vmem:[%s789 + $0x10] sm:$0xff] %v794
                  %v796 = vld [vmem:[%s788 + $0x30] sm:$0xff]
                  %797 = vst [vmem:[%s789 + $0x18] sm:$0xff] %v796
                $region89: #{_lambda_.3} parent=83 // loop_footer
                  %s787 = sadd.s32 1, %s783
                $region90: #{_lambda_.3} parent=83 // loop_footer_branch
                  %782 = sbr.rel target = $region86
                $region91: #{_lambda_.3} parent=83 // loop_exit
                  _
              $region84: #{_lambda_.3} parent=68 // pred_fallthru
                _
              // Predicated region
              $region92: #{_lambda_.3} parent=68 // pred_check
                _
              $region93: #{_lambda_.3} parent=68 // pred_check_branch
                %799 = sbr.rel target = $region95
              $region94: #{_lambda_.3} parent=68 // pred_region
                _
              $region95: #{_lambda_.3} parent=68 // pred_fallthru
                _
            $region69: #{_lambda_.3} parent=64 // pred_fallthru
              _
            // Predicated region
            $region70: #{_lambda_.3} parent=64 // pred_check
              _
            $region71: #{_lambda_.3} parent=64 // pred_check_branch
              %762 = sbr.rel target = $region73
            $region72: #{_lambda_.3} parent=64 // pred_region
              loop: start=0, step=1, limit=1
              $region74: #{_lambda_.3} parent=72 // loop_pre_header
                _
              $region75: #{_lambda_.3} parent=72 // loop_header
                %s765 = sphi 0, %s769
                %p766 = scmp.ge.s32.totalorder %s765, 1
                %s770 = sphi %s756, %s756
                %s771 = sphi %s752, %s752
              $region76: #{_lambda_.3} parent=72 // loop_header_branch
                %768 = sbr.rel (%p766) target = $region80
              $region77: #{_lambda_.3} parent=72 // loop_body
                %v772 = vld [vmem:[%s770] sm:$0xff]
                %773 = vst [vmem:[%s771] sm:$0xff] %v772
                %v774 = vld [vmem:[%s770 + $0x10] sm:$0xff]
                %775 = vst [vmem:[%s771 + $0x8] sm:$0xff] %v774
                %v776 = vld [vmem:[%s770 + $0x20] sm:$0xff]
                %777 = vst [vmem:[%s771 + $0x10] sm:$0xff] %v776
                %v778 = vld [vmem:[%s770 + $0x30] sm:$0xff]
                %779 = vst [vmem:[%s771 + $0x18] sm:$0xff] %v778
              $region78: #{_lambda_.3} parent=72 // loop_footer
                %s769 = sadd.s32 1, %s765
              $region79: #{_lambda_.3} parent=72 // loop_footer_branch
                %764 = sbr.rel target = $region75
              $region80: #{_lambda_.3} parent=72 // loop_exit
                _
            $region73: #{_lambda_.3} parent=64 // pred_fallthru
              _
          $region65: #{_lambda_.3} parent=60 // pred_fallthru
            _
          %800 = vnop
        $region61: #{_lambda_.3} parent=15 // pred_fallthru
          _
      $region16: #{_lambda_.3} parent=5 // pred_fallthru
        _
      %p801 = scmp.le.s32.totalorder 1, %s8
      %p802 = scmp.lt.s32.totalorder %s8, 5
      %p803 = pnand %p801, %p802
      %p804 = pneg %p803
      // Predicated region
      $region96: #{_lambda_.3} parent=5 // pred_check
        _
      $region97: #{_lambda_.3} parent=5 // pred_check_branch
        %806 = sbr.rel (%p803) target = $region99
      $region98: #{_lambda_.3} parent=5 // pred_region
        %s807 = ssub.s32 %s8, 1
        %s808 = sand.u32 %s35, 1
        %s809 = sand.u32 %s35, 1
        %s810 = smul.addr %s809, 576
        %s811 = scalar_lea.vmem [#allocation2], %s810
        // Predicated region
        $region100: #{_lambda_.3} parent=98 // pred_check
          %p812 = pneg %p48
        $region101: #{_lambda_.3} parent=98 // pred_check_branch
          %814 = sbr.rel (%p812) target = $region103
        $region102: #{_lambda_.3} parent=98 // pred_region
          _
        $region103: #{_lambda_.3} parent=98 // pred_fallthru
          _
        %s815 = sand.u32 %s63, 1
        %s816 = sand.u32 %s63, 1
        %s817 = smul.addr %s816, 32
        %s818 = scalar_lea.vmem [#allocation3], %s817
        // Predicated region
        $region104: #{_lambda_.3} parent=98 // pred_check
          %p819 = pneg %p76
        $region105: #{_lambda_.3} parent=98 // pred_check_branch
          %821 = sbr.rel (%p819) target = $region107
        $region106: #{_lambda_.3} parent=98 // pred_region
          _
        $region107: #{_lambda_.3} parent=98 // pred_fallthru
          _
        %s822 = sand.u32 %s35, 1
        %s823 = sand.u32 %s35, 1
        %s824 = smul.addr %s823, 576
        %s825 = scalar_lea.vmem [#allocation2], %s824
        %p826 = pneg %p48
        %p827 = pneg %p45
        %s828 = sand.u32 %s63, 1
        %s829 = sand.u32 %s63, 1
        %s830 = smul.addr %s829, 32
        %s831 = scalar_lea.vmem [#allocation3], %s830
        %p832 = pneg %p76
        %p833 = pneg %p73
        %p834 = pneg %p104
        %p835 = pneg %p101
        %s836 = sand.u32 %s91, 1
        %s837 = sand.u32 %s91, 1
        %s838 = smul.addr %s837, 32
        %s839 = scalar_lea.vmem [#allocation4], %s838
        %s840 = smul.u32 16, %s18
        %v841 = vld [vmem:[%s811] sm:$0xf]
        %v842 = vld [vmem:[%s811 + $0x4] sm:$0xf]
        %v843 = vld [vmem:[%s811 + $0x8] sm:$0xf]
        %v844 = vld [vmem:[%s811 + $0xc] sm:$0xf]
        %v845 = vld [vmem:[%s811 + $0x10] sm:$0xf]
        %v846 = vld [vmem:[%s811 + $0x14] sm:$0xf]
        %v847 = vld [vmem:[%s811 + $0x18] sm:$0xf]
        %v848 = vld [vmem:[%s811 + $0x1c] sm:$0xf]
        %v849 = vld [vmem:[%s811 + $0x20] sm:$0xf]
        %v850 = vld [vmem:[%s811 + $0x24] sm:$0xf]
        %v851 = vld [vmem:[%s811 + $0x28] sm:$0xf]
        %v852 = vld [vmem:[%s811 + $0x2c] sm:$0xf]
        %v853 = vld [vmem:[%s811 + $0x30] sm:$0xf]
        %v854 = vld [vmem:[%s811 + $0x34] sm:$0xf]
        %v855 = vld [vmem:[%s811 + $0x38] sm:$0xf]
        %v856 = vld [vmem:[%s811 + $0x3c] sm:$0xf]
        %s857 = scalar_lea.vmem %s811, 64 [#allocation2]
        %v858 = vld [vmem:[%s857] sm:$0xf]
        %v859 = vld [vmem:[%s857 + $0x4] sm:$0xf]
        %v860 = vld [vmem:[%s857 + $0x8] sm:$0xf]
        %v861 = vld [vmem:[%s857 + $0xc] sm:$0xf]
        %v862 = vld [vmem:[%s857 + $0x10] sm:$0xf]
        %v863 = vld [vmem:[%s857 + $0x14] sm:$0xf]
        %v864 = vld [vmem:[%s857 + $0x18] sm:$0xf]
        %v865 = vld [vmem:[%s857 + $0x1c] sm:$0xf]
        %v866 = vld [vmem:[%s857 + $0x20] sm:$0xf]
        %v867 = vld [vmem:[%s857 + $0x24] sm:$0xf]
        %v868 = vld [vmem:[%s857 + $0x28] sm:$0xf]
        %v869 = vld [vmem:[%s857 + $0x2c] sm:$0xf]
        %v870 = vld [vmem:[%s857 + $0x30] sm:$0xf]
        %v871 = vld [vmem:[%s857 + $0x34] sm:$0xf]
        %v872 = vld [vmem:[%s857 + $0x38] sm:$0xf]
        %v873 = vld [vmem:[%s857 + $0x3c] sm:$0xf]
        %v874 = vmax.bf16 %v841, %v858
        %v875 = vmax.bf16 %v842, %v859
        %v876 = vmax.bf16 %v843, %v860
        %v877 = vmax.bf16 %v844, %v861
        %v878 = vmax.bf16 %v845, %v862
        %v879 = vmax.bf16 %v846, %v863
        %v880 = vmax.bf16 %v847, %v864
        %v881 = vmax.bf16 %v848, %v865
        %v882 = vmax.bf16 %v849, %v866
        %v883 = vmax.bf16 %v850, %v867
        %v884 = vmax.bf16 %v851, %v868
        %v885 = vmax.bf16 %v852, %v869
        %v886 = vmax.bf16 %v853, %v870
        %v887 = vmax.bf16 %v854, %v871
        %v888 = vmax.bf16 %v855, %v872
        %v889 = vmax.bf16 %v856, %v873
        %s890 = scalar_lea.vmem %s811, 128 [#allocation2]
        %v891 = vld [vmem:[%s890] sm:$0xf]
        %v892 = vld [vmem:[%s890 + $0x4] sm:$0xf]
        %v893 = vld [vmem:[%s890 + $0x8] sm:$0xf]
        %v894 = vld [vmem:[%s890 + $0xc] sm:$0xf]
        %v895 = vld [vmem:[%s890 + $0x10] sm:$0xf]
        %v896 = vld [vmem:[%s890 + $0x14] sm:$0xf]
        %v897 = vld [vmem:[%s890 + $0x18] sm:$0xf]
        %v898 = vld [vmem:[%s890 + $0x1c] sm:$0xf]
        %v899 = vld [vmem:[%s890 + $0x20] sm:$0xf]
        %v900 = vld [vmem:[%s890 + $0x24] sm:$0xf]
        %v901 = vld [vmem:[%s890 + $0x28] sm:$0xf]
        %v902 = vld [vmem:[%s890 + $0x2c] sm:$0xf]
        %v903 = vld [vmem:[%s890 + $0x30] sm:$0xf]
        %v904 = vld [vmem:[%s890 + $0x34] sm:$0xf]
        %v905 = vld [vmem:[%s890 + $0x38] sm:$0xf]
        %v906 = vld [vmem:[%s890 + $0x3c] sm:$0xf]
        %v907 = vmax.bf16 %v874, %v891
        %v908 = vmax.bf16 %v875, %v892
        %v909 = vmax.bf16 %v876, %v893
        %v910 = vmax.bf16 %v877, %v894
        %v911 = vmax.bf16 %v878, %v895
        %v912 = vmax.bf16 %v879, %v896
        %v913 = vmax.bf16 %v880, %v897
        %v914 = vmax.bf16 %v881, %v898
        %v915 = vmax.bf16 %v882, %v899
        %v916 = vmax.bf16 %v883, %v900
        %v917 = vmax.bf16 %v884, %v901
        %v918 = vmax.bf16 %v885, %v902
        %v919 = vmax.bf16 %v886, %v903
        %v920 = vmax.bf16 %v887, %v904
        %v921 = vmax.bf16 %v888, %v905
        %v922 = vmax.bf16 %v889, %v906
        %s923 = scalar_lea.vmem %s811, 192 [#allocation2]
        %v924 = vld [vmem:[%s923] sm:$0xf]
        %v925 = vld [vmem:[%s923 + $0x4] sm:$0xf]
        %v926 = vld [vmem:[%s923 + $0x8] sm:$0xf]
        %v927 = vld [vmem:[%s923 + $0xc] sm:$0xf]
        %v928 = vld [vmem:[%s923 + $0x10] sm:$0xf]
        %v929 = vld [vmem:[%s923 + $0x14] sm:$0xf]
        %v930 = vld [vmem:[%s923 + $0x18] sm:$0xf]
        %v931 = vld [vmem:[%s923 + $0x1c] sm:$0xf]
        %v932 = vld [vmem:[%s923 + $0x20] sm:$0xf]
        %v933 = vld [vmem:[%s923 + $0x24] sm:$0xf]
        %v934 = vld [vmem:[%s923 + $0x28] sm:$0xf]
        %v935 = vld [vmem:[%s923 + $0x2c] sm:$0xf]
        %v936 = vld [vmem:[%s923 + $0x30] sm:$0xf]
        %v937 = vld [vmem:[%s923 + $0x34] sm:$0xf]
        %v938 = vld [vmem:[%s923 + $0x38] sm:$0xf]
        %v939 = vld [vmem:[%s923 + $0x3c] sm:$0xf]
        %v940 = vmax.bf16 %v907, %v924
        %v941 = vmax.bf16 %v908, %v925
        %v942 = vmax.bf16 %v909, %v926
        %v943 = vmax.bf16 %v910, %v927
        %v944 = vmax.bf16 %v911, %v928
        %v945 = vmax.bf16 %v912, %v929
        %v946 = vmax.bf16 %v913, %v930
        %v947 = vmax.bf16 %v914, %v931
        %v948 = vmax.bf16 %v915, %v932
        %v949 = vmax.bf16 %v916, %v933
        %v950 = vmax.bf16 %v917, %v934
        %v951 = vmax.bf16 %v918, %v935
        %v952 = vmax.bf16 %v919, %v936
        %v953 = vmax.bf16 %v920, %v937
        %v954 = vmax.bf16 %v921, %v938
        %v955 = vmax.bf16 %v922, %v939
        %s956 = scalar_lea.vmem %s811, 256 [#allocation2]
        %v957 = vld [vmem:[%s956] sm:$0xf]
        %v958 = vld [vmem:[%s956 + $0x4] sm:$0xf]
        %v959 = vld [vmem:[%s956 + $0x8] sm:$0xf]
        %v960 = vld [vmem:[%s956 + $0xc] sm:$0xf]
        %v961 = vld [vmem:[%s956 + $0x10] sm:$0xf]
        %v962 = vld [vmem:[%s956 + $0x14] sm:$0xf]
        %v963 = vld [vmem:[%s956 + $0x18] sm:$0xf]
        %v964 = vld [vmem:[%s956 + $0x1c] sm:$0xf]
        %v965 = vld [vmem:[%s956 + $0x20] sm:$0xf]
        %v966 = vld [vmem:[%s956 + $0x24] sm:$0xf]
        %v967 = vld [vmem:[%s956 + $0x28] sm:$0xf]
        %v968 = vld [vmem:[%s956 + $0x2c] sm:$0xf]
        %v969 = vld [vmem:[%s956 + $0x30] sm:$0xf]
        %v970 = vld [vmem:[%s956 + $0x34] sm:$0xf]
        %v971 = vld [vmem:[%s956 + $0x38] sm:$0xf]
        %v972 = vld [vmem:[%s956 + $0x3c] sm:$0xf]
        %v973 = vmax.bf16 %v940, %v957
        %v974 = vmax.bf16 %v941, %v958
        %v975 = vmax.bf16 %v942, %v959
        %v976 = vmax.bf16 %v943, %v960
        %v977 = vmax.bf16 %v944, %v961
        %v978 = vmax.bf16 %v945, %v962
        %v979 = vmax.bf16 %v946, %v963
        %v980 = vmax.bf16 %v947, %v964
        %v981 = vmax.bf16 %v948, %v965
        %v982 = vmax.bf16 %v949, %v966
        %v983 = vmax.bf16 %v950, %v967
        %v984 = vmax.bf16 %v951, %v968
        %v985 = vmax.bf16 %v952, %v969
        %v986 = vmax.bf16 %v953, %v970
        %v987 = vmax.bf16 %v954, %v971
        %v988 = vmax.bf16 %v955, %v972
        %s989 = scalar_lea.vmem %s811, 320 [#allocation2]
        %v990 = vld [vmem:[%s989] sm:$0xf]
        %v991 = vld [vmem:[%s989 + $0x4] sm:$0xf]
        %v992 = vld [vmem:[%s989 + $0x8] sm:$0xf]
        %v993 = vld [vmem:[%s989 + $0xc] sm:$0xf]
        %v994 = vld [vmem:[%s989 + $0x10] sm:$0xf]
        %v995 = vld [vmem:[%s989 + $0x14] sm:$0xf]
        %v996 = vld [vmem:[%s989 + $0x18] sm:$0xf]
        %v997 = vld [vmem:[%s989 + $0x1c] sm:$0xf]
        %v998 = vld [vmem:[%s989 + $0x20] sm:$0xf]
        %v999 = vld [vmem:[%s989 + $0x24] sm:$0xf]
        %v1000 = vld [vmem:[%s989 + $0x28] sm:$0xf]
        %v1001 = vld [vmem:[%s989 + $0x2c] sm:$0xf]
        %v1002 = vld [vmem:[%s989 + $0x30] sm:$0xf]
        %v1003 = vld [vmem:[%s989 + $0x34] sm:$0xf]
        %v1004 = vld [vmem:[%s989 + $0x38] sm:$0xf]
        %v1005 = vld [vmem:[%s989 + $0x3c] sm:$0xf]
        %v1006 = vmax.bf16 %v973, %v990
        %v1007 = vmax.bf16 %v974, %v991
        %v1008 = vmax.bf16 %v975, %v992
        %v1009 = vmax.bf16 %v976, %v993
        %v1010 = vmax.bf16 %v977, %v994
        %v1011 = vmax.bf16 %v978, %v995
        %v1012 = vmax.bf16 %v979, %v996
        %v1013 = vmax.bf16 %v980, %v997
        %v1014 = vmax.bf16 %v981, %v998
        %v1015 = vmax.bf16 %v982, %v999
        %v1016 = vmax.bf16 %v983, %v1000
        %v1017 = vmax.bf16 %v984, %v1001
        %v1018 = vmax.bf16 %v985, %v1002
        %v1019 = vmax.bf16 %v986, %v1003
        %v1020 = vmax.bf16 %v987, %v1004
        %v1021 = vmax.bf16 %v988, %v1005
        %s1022 = scalar_lea.vmem %s811, 384 [#allocation2]
        %v1023 = vld [vmem:[%s1022] sm:$0xf]
        %v1024 = vld [vmem:[%s1022 + $0x4] sm:$0xf]
        %v1025 = vld [vmem:[%s1022 + $0x8] sm:$0xf]
        %v1026 = vld [vmem:[%s1022 + $0xc] sm:$0xf]
        %v1027 = vld [vmem:[%s1022 + $0x10] sm:$0xf]
        %v1028 = vld [vmem:[%s1022 + $0x14] sm:$0xf]
        %v1029 = vld [vmem:[%s1022 + $0x18] sm:$0xf]
        %v1030 = vld [vmem:[%s1022 + $0x1c] sm:$0xf]
        %v1031 = vld [vmem:[%s1022 + $0x20] sm:$0xf]
        %v1032 = vld [vmem:[%s1022 + $0x24] sm:$0xf]
        %v1033 = vld [vmem:[%s1022 + $0x28] sm:$0xf]
        %v1034 = vld [vmem:[%s1022 + $0x2c] sm:$0xf]
        %v1035 = vld [vmem:[%s1022 + $0x30] sm:$0xf]
        %v1036 = vld [vmem:[%s1022 + $0x34] sm:$0xf]
        %v1037 = vld [vmem:[%s1022 + $0x38] sm:$0xf]
        %v1038 = vld [vmem:[%s1022 + $0x3c] sm:$0xf]
        %v1039 = vmax.bf16 %v1006, %v1023
        %v1040 = vmax.bf16 %v1007, %v1024
        %v1041 = vmax.bf16 %v1008, %v1025
        %v1042 = vmax.bf16 %v1009, %v1026
        %v1043 = vmax.bf16 %v1010, %v1027
        %v1044 = vmax.bf16 %v1011, %v1028
        %v1045 = vmax.bf16 %v1012, %v1029
        %v1046 = vmax.bf16 %v1013, %v1030
        %v1047 = vmax.bf16 %v1014, %v1031
        %v1048 = vmax.bf16 %v1015, %v1032
        %v1049 = vmax.bf16 %v1016, %v1033
        %v1050 = vmax.bf16 %v1017, %v1034
        %v1051 = vmax.bf16 %v1018, %v1035
        %v1052 = vmax.bf16 %v1019, %v1036
        %v1053 = vmax.bf16 %v1020, %v1037
        %v1054 = vmax.bf16 %v1021, %v1038
        %s1055 = scalar_lea.vmem %s811, 448 [#allocation2]
        %v1056 = vld [vmem:[%s1055] sm:$0xf]
        %v1057 = vld [vmem:[%s1055 + $0x4] sm:$0xf]
        %v1058 = vld [vmem:[%s1055 + $0x8] sm:$0xf]
        %v1059 = vld [vmem:[%s1055 + $0xc] sm:$0xf]
        %v1060 = vld [vmem:[%s1055 + $0x10] sm:$0xf]
        %v1061 = vld [vmem:[%s1055 + $0x14] sm:$0xf]
        %v1062 = vld [vmem:[%s1055 + $0x18] sm:$0xf]
        %v1063 = vld [vmem:[%s1055 + $0x1c] sm:$0xf]
        %v1064 = vld [vmem:[%s1055 + $0x20] sm:$0xf]
        %v1065 = vld [vmem:[%s1055 + $0x24] sm:$0xf]
        %v1066 = vld [vmem:[%s1055 + $0x28] sm:$0xf]
        %v1067 = vld [vmem:[%s1055 + $0x2c] sm:$0xf]
        %v1068 = vld [vmem:[%s1055 + $0x30] sm:$0xf]
        %v1069 = vld [vmem:[%s1055 + $0x34] sm:$0xf]
        %v1070 = vld [vmem:[%s1055 + $0x38] sm:$0xf]
        %v1071 = vld [vmem:[%s1055 + $0x3c] sm:$0xf]
        %v1072 = vmax.bf16 %v1039, %v1056
        %v1073 = vmax.bf16 %v1040, %v1057
        %v1074 = vmax.bf16 %v1041, %v1058
        %v1075 = vmax.bf16 %v1042, %v1059
        %v1076 = vmax.bf16 %v1043, %v1060
        %v1077 = vmax.bf16 %v1044, %v1061
        %v1078 = vmax.bf16 %v1045, %v1062
        %v1079 = vmax.bf16 %v1046, %v1063
        %v1080 = vmax.bf16 %v1047, %v1064
        %v1081 = vmax.bf16 %v1048, %v1065
        %v1082 = vmax.bf16 %v1049, %v1066
        %v1083 = vmax.bf16 %v1050, %v1067
        %v1084 = vmax.bf16 %v1051, %v1068
        %v1085 = vmax.bf16 %v1052, %v1069
        %v1086 = vmax.bf16 %v1053, %v1070
        %v1087 = vmax.bf16 %v1054, %v1071
        %s1088 = scalar_lea.vmem %s811, 512 [#allocation2]
        %v1089 = vld [vmem:[%s1088] sm:$0xf]
        %v1090 = vld [vmem:[%s1088 + $0x4] sm:$0xf]
        %v1091 = vld [vmem:[%s1088 + $0x8] sm:$0xf]
        %v1092 = vld [vmem:[%s1088 + $0xc] sm:$0xf]
        %v1093 = vld [vmem:[%s1088 + $0x10] sm:$0xf]
        %v1094 = vld [vmem:[%s1088 + $0x14] sm:$0xf]
        %v1095 = vld [vmem:[%s1088 + $0x18] sm:$0xf]
        %v1096 = vld [vmem:[%s1088 + $0x1c] sm:$0xf]
        %v1097 = vld [vmem:[%s1088 + $0x20] sm:$0xf]
        %v1098 = vld [vmem:[%s1088 + $0x24] sm:$0xf]
        %v1099 = vld [vmem:[%s1088 + $0x28] sm:$0xf]
        %v1100 = vld [vmem:[%s1088 + $0x2c] sm:$0xf]
        %v1101 = vld [vmem:[%s1088 + $0x30] sm:$0xf]
        %v1102 = vld [vmem:[%s1088 + $0x34] sm:$0xf]
        %v1103 = vld [vmem:[%s1088 + $0x38] sm:$0xf]
        %v1104 = vld [vmem:[%s1088 + $0x3c] sm:$0xf]
        %v1105 = vmax.bf16 %v1072, %v1089
        %v1106 = vmax.bf16 %v1073, %v1090
        %v1107 = vmax.bf16 %v1074, %v1091
        %v1108 = vmax.bf16 %v1075, %v1092
        %v1109 = vmax.bf16 %v1076, %v1093
        %v1110 = vmax.bf16 %v1077, %v1094
        %v1111 = vmax.bf16 %v1078, %v1095
        %v1112 = vmax.bf16 %v1079, %v1096
        %v1113 = vmax.bf16 %v1080, %v1097
        %v1114 = vmax.bf16 %v1081, %v1098
        %v1115 = vmax.bf16 %v1082, %v1099
        %v1116 = vmax.bf16 %v1083, %v1100
        %v1117 = vmax.bf16 %v1084, %v1101
        %v1118 = vmax.bf16 %v1085, %v1102
        %v1119 = vmax.bf16 %v1086, %v1103
        %v1120 = vmax.bf16 %v1087, %v1104
        %v1121 = vunpack.c.l.bf16 %v1105
        %v1122 = vunpack.c.l.bf16 %v1106
        %v1123 = vunpack.c.l.bf16 %v1107
        %v1124 = vunpack.c.l.bf16 %v1108
        %v1125 = vunpack.c.l.bf16 %v1109
        %v1126 = vunpack.c.l.bf16 %v1110
        %v1127 = vunpack.c.l.bf16 %v1111
        %v1128 = vunpack.c.l.bf16 %v1112
        %v1129 = vunpack.c.l.bf16 %v1113
        %v1130 = vunpack.c.l.bf16 %v1114
        %v1131 = vunpack.c.l.bf16 %v1115
        %v1132 = vunpack.c.l.bf16 %v1116
        %v1133 = vunpack.c.l.bf16 %v1117
        %v1134 = vunpack.c.l.bf16 %v1118
        %v1135 = vunpack.c.l.bf16 %v1119
        %v1136 = vunpack.c.l.bf16 %v1120
        %1137 = vxpose.xlu0.b32.start [1/16] %v1121, 128
        %1138 = vxpose.xlu0.b32.cont [2/16] %v1122, 128
        %1139 = vxpose.xlu0.b32.cont [3/16] %v1123, 128
        %1140 = vxpose.xlu0.b32.cont [4/16] %v1124, 128
        %1141 = vxpose.xlu0.b32.cont [5/16] %v1125, 128
        %1142 = vxpose.xlu0.b32.cont [6/16] %v1126, 128
        %1143 = vxpose.xlu0.b32.cont [7/16] %v1127, 128
        %1144 = vxpose.xlu0.b32.cont [8/16] %v1128, 128
        %1145 = vxpose.xlu0.b32.cont [9/16] %v1129, 128
        %1146 = vxpose.xlu0.b32.cont [10/16] %v1130, 128
        %1147 = vxpose.xlu0.b32.cont [11/16] %v1131, 128
        %1148 = vxpose.xlu0.b32.cont [12/16] %v1132, 128
        %1149 = vxpose.xlu0.b32.cont [13/16] %v1133, 128
        %1150 = vxpose.xlu0.b32.cont [14/16] %v1134, 128
        %1151 = vxpose.xlu0.b32.cont [15/16] %v1135, 128
        %1152 = vxpose.xlu0.b32.end [16/16] %v1136, 128
        %v1153 = vpop.trf.xlu0
        %v1154 = vpop.trf.xlu0
        %v1155 = vpop.trf.xlu0
        %v1156 = vpop.trf.xlu0
        %v1157 = vpop.trf.xlu0
        %v1158 = vpop.trf.xlu0
        %v1159 = vpop.trf.xlu0
        %v1160 = vpop.trf.xlu0
        %v1161 = vpop.trf.xlu0
        %v1162 = vpop.trf.xlu0
        %v1163 = vpop.trf.xlu0
        %v1164 = vpop.trf.xlu0
        %v1165 = vpop.trf.xlu0
        %v1166 = vpop.trf.xlu0
        %v1167 = vpop.trf.xlu0
        %v1168 = vpop.trf.xlu0
        %v1169 = vld [vmem:[%s818] sm:$0xff]
        %v1170 = vld [vmem:[%s818 + $0x8] sm:$0xff]
        %v1171 = vld [vmem:[%s818 + $0x10] sm:$0xff]
        %v1172 = vld [vmem:[%s818 + $0x18] sm:$0xff]
        %v1173 = vadd.f32 %v1153, %v1169
        %v1174 = vadd.f32 %v1154, %v1170
        %v1175 = vadd.f32 %v1155, %v1171
        %v1176 = vadd.f32 %v1156, %v1172
        %v1177 = vmax.f32 %v1173, 0.0
        %v1178 = vmax.f32 %v1174, 0.0
        %v1179 = vmax.f32 %v1175, 0.0
        %v1180 = vmax.f32 %v1176, 0.0
        %1181 = vst [vmem:[%s839] sm:$0xff] %v1177
        %1182 = vst [vmem:[%s839 + $0x8] sm:$0xff] %v1178
        %1183 = vst [vmem:[%s839 + $0x10] sm:$0xff] %v1179
        %1184 = vst [vmem:[%s839 + $0x18] sm:$0xff] %v1180
        %s1185 = sand.u32 %s91, 1
        %s1186 = sand.u32 %s91, 1
        %s1187 = smul.addr %s1186, 32
        %s1188 = scalar_lea.vmem [#allocation4], %s1187
        // Predicated region
        $region108: #{_lambda_.3} parent=98 // pred_check
          %p1189 = pneg %p101
        $region109: #{_lambda_.3} parent=98 // pred_check_branch
          %1191 = sbr.rel (%p1189) target = $region111
        $region110: #{_lambda_.3} parent=98 // pred_region
          %s1192 = smul.addr %s17, 8
          %s1193 = sadd.s32 %s18, %s1192
          %s1194 = smul.addr %s1193, 8
          %s1195 = scalar_lea.vmem %s2, %s1194
          // Predicated region
          $region112: #{_lambda_.3} parent=110 // pred_check
            _
          $region113: #{_lambda_.3} parent=110 // pred_check_branch
            %1197 = sbr.rel (0) target = $region115
          $region114: #{_lambda_.3} parent=110 // pred_region
            // Predicated region
            $region116: #{_lambda_.3} parent=114 // pred_check
              _
            $region117: #{_lambda_.3} parent=114 // pred_check_branch
              %1199 = sbr.rel (0) target = $region119
            $region118: #{_lambda_.3} parent=114 // pred_region
              // Predicated region
              $region131: #{_lambda_.3} parent=118 // pred_check
                _
              $region132: #{_lambda_.3} parent=118 // pred_check_branch
                %1220 = sbr.rel (0) target = $region134
              $region133: #{_lambda_.3} parent=118 // pred_region
                loop: start=0, step=1, limit=1
                $region135: #{_lambda_.3} parent=133 // loop_pre_header
                  _
                $region136: #{_lambda_.3} parent=133 // loop_header
                  %s1222 = sphi 0, %s1226
                  %p1223 = scmp.ge.s32.totalorder %s1222, 1
                  %s1227 = sphi %s1188, %s1188
                  %s1228 = sphi %s1195, %s1195
                $region137: #{_lambda_.3} parent=133 // loop_header_branch
                  %1225 = sbr.rel (%p1223) target = $region141
                $region138: #{_lambda_.3} parent=133 // loop_body
                  %v1229 = vld [vmem:[%s1227] sm:$0xff]
                  %1230 = vst [vmem:[%s1228] sm:$0xff] %v1229
                  %v1231 = vld [vmem:[%s1227 + $0x8] sm:$0xff]
                  %1232 = vst [vmem:[%s1228 + $0x10] sm:$0xff] %v1231
                  %v1233 = vld [vmem:[%s1227 + $0x10] sm:$0xff]
                  %1234 = vst [vmem:[%s1228 + $0x20] sm:$0xff] %v1233
                  %v1235 = vld [vmem:[%s1227 + $0x18] sm:$0xff]
                  %1236 = vst [vmem:[%s1228 + $0x30] sm:$0xff] %v1235
                $region139: #{_lambda_.3} parent=133 // loop_footer
                  %s1226 = sadd.s32 1, %s1222
                $region140: #{_lambda_.3} parent=133 // loop_footer_branch
                  %1221 = sbr.rel target = $region136
                $region141: #{_lambda_.3} parent=133 // loop_exit
                  _
              $region134: #{_lambda_.3} parent=118 // pred_fallthru
                _
              // Predicated region
              $region142: #{_lambda_.3} parent=118 // pred_check
                _
              $region143: #{_lambda_.3} parent=118 // pred_check_branch
                %1238 = sbr.rel target = $region145
              $region144: #{_lambda_.3} parent=118 // pred_region
                _
              $region145: #{_lambda_.3} parent=118 // pred_fallthru
                _
            $region119: #{_lambda_.3} parent=114 // pred_fallthru
              _
            // Predicated region
            $region120: #{_lambda_.3} parent=114 // pred_check
              _
            $region121: #{_lambda_.3} parent=114 // pred_check_branch
              %1201 = sbr.rel target = $region123
            $region122: #{_lambda_.3} parent=114 // pred_region
              loop: start=0, step=1, limit=1
              $region124: #{_lambda_.3} parent=122 // loop_pre_header
                _
              $region125: #{_lambda_.3} parent=122 // loop_header
                %s1204 = sphi 0, %s1208
                %p1205 = scmp.ge.s32.totalorder %s1204, 1
                %s1209 = sphi %s1188, %s1188
                %s1210 = sphi %s1195, %s1195
              $region126: #{_lambda_.3} parent=122 // loop_header_branch
                %1207 = sbr.rel (%p1205) target = $region130
              $region127: #{_lambda_.3} parent=122 // loop_body
                %v1211 = vld [vmem:[%s1209] sm:$0xff]
                %1212 = vst [vmem:[%s1210] sm:$0xff] %v1211
                %v1213 = vld [vmem:[%s1209 + $0x8] sm:$0xff]
                %1214 = vst [vmem:[%s1210 + $0x10] sm:$0xff] %v1213
                %v1215 = vld [vmem:[%s1209 + $0x10] sm:$0xff]
                %1216 = vst [vmem:[%s1210 + $0x20] sm:$0xff] %v1215
                %v1217 = vld [vmem:[%s1209 + $0x18] sm:$0xff]
                %1218 = vst [vmem:[%s1210 + $0x30] sm:$0xff] %v1217
              $region128: #{_lambda_.3} parent=122 // loop_footer
                %s1208 = sadd.s32 1, %s1204
              $region129: #{_lambda_.3} parent=122 // loop_footer_branch
                %1203 = sbr.rel target = $region125
              $region130: #{_lambda_.3} parent=122 // loop_exit
                _
            $region123: #{_lambda_.3} parent=114 // pred_fallthru
              _
          $region115: #{_lambda_.3} parent=110 // pred_fallthru
            _
          %1239 = vnop
        $region111: #{_lambda_.3} parent=98 // pred_fallthru
          _
      $region99: #{_lambda_.3} parent=5 // pred_fallthru
        _
      %p1240 = scmp.le.s32.totalorder 2, %s8
      // Predicated region
      $region146: #{_lambda_.3} parent=5 // pred_check
        %p1241 = pneg %p1240
      $region147: #{_lambda_.3} parent=5 // pred_check_branch
        %1243 = sbr.rel (%p1241) target = $region149
      $region148: #{_lambda_.3} parent=5 // pred_region
        %s1244 = ssub.s32 %s8, 2
        // Predicated region
        $region150: #{_lambda_.3} parent=148 // pred_check
          %p1245 = pneg %p107
        $region151: #{_lambda_.3} parent=148 // pred_check_branch
          %1247 = sbr.rel (%p1245) target = $region153
        $region152: #{_lambda_.3} parent=148 // pred_region
          %s1248 = sand.u32 %s92, 1
          %s1249 = sand.u32 %s92, 1
          %s1250 = smul.addr %s1249, 32
          %s1251 = scalar_lea.vmem [#allocation4], %s1250
        $region153: #{_lambda_.3} parent=148 // pred_fallthru
          _
      $region149: #{_lambda_.3} parent=5 // pred_fallthru
        _
    $region6: #{_lambda_.3} parent=1 // loop_footer
      %s12 = sadd.s32 1, %s8
    $region7: #{_lambda_.3} parent=1 // loop_footer_branch
      %7 = sbr.rel target = $region3
    $region8: #{_lambda_.3} parent=1 // loop_exit
      _

// kernel: _lambda_.2
$region0: #{_lambda_.2}
  #allocation0 [shape = 'u32[]', space=smem, size = 0x4, offset = 0x4, fixed_abs, tag = 'smem constant byte address 0x4 - core index']
  #allocation1 [shape = 'u32[144,128]{1,0:T(1,128)}', space=vmem, size = 0x12000, scoped, tag = 'internal scratch']
  %s0 = inlined_call_operand.vmem [shape: bf16[2,256,16], index: 0, kind: input, shape index: {}]
  %s1 = inlined_call_operand.vmem [shape: bf16[2,256,16], index: 1, kind: input, shape index: {}]
  %s2 = inlined_call_operand.vmem [shape: bf16[2,16,256], index: 2, kind: input, shape index: {}]
  %s3 = inlined_call_operand.hbm [shape: bf16[16,64], index: 3, kind: input, shape index: {}]
  %s4 = inlined_call_operand.hbm [shape: f32[1,32], index: 4, kind: input, shape index: {}]
  %s5 = inlined_call_operand.vmem [shape: bf16[2,256,256], index: 5, kind: output, shape index: {0}]
  %s6 = inlined_call_operand.vmem [shape: f32[2,32,256], index: 6, kind: output, shape index: {1}]
  %s7 = inlined_call_operand.vmem [shape: bf16[2,256,32], index: 7, kind: output, shape index: {2}]
  %8 = xla_tuple %s5, %s6, %s7
  %s9 = sld [smem:[#allocation0]]
  $region111: #{_lambda_.2} parent=0
    _
  %s11 = ssub.s32 1, %s9
  %s12 = scalar_select 0, %s11, %s9
  $region1: #{_lambda_.2} parent=0
    #allocation2 [shape = 'u8[4096]{0}', space=vmem, size = 0x1000, scoped, tag = 'input window, operand 3, single buffered']
    #allocation3 [shape = 's32[2]{0}', space=sflag, size = 0x8, scoped, tag = 'scoped memory for _lambda_.2']
    #allocation4 [shape = 'u8[512]{0}', space=vmem, size = 0x400, scoped, tag = 'input window, operand 4, single buffered']
    #allocation5 [shape = 's32[1]{0}', space=sflag, size = 0x4, scoped, tag = 'scoped memory for _lambda_.2']
    #allocation6 [shape = 'u8[32768]{0}', space=vmem, size = 0x8000, scoped, tag = 'output window, operand 1']
    %13 = vsyncpa [#allocation3], 0
    %14 = vsyncpa [#allocation5], 0
    loop: start=0, step=1, limit=6
    $region2: #{_lambda_.2} parent=1 // loop_pre_header
      _
    $region3: #{_lambda_.2} parent=1 // loop_header
      %s16 = sphi 0, %s20
      %p17 = scmp.ge.s32.totalorder %s16, 6
      %s23 = sphi 0, %s35
      %s24 = sphi 0, %s31
      %s25 = sphi 0, %s23
      %s26 = sphi 0, %s24
      %s27 = sphi 0, %s25
      %s28 = sphi 0, %s26
      %s40 = sphi 0, %s42
      %s43 = sphi 0, %s40
      %s44 = sphi 0, %s43
      %s60 = sphi 0, %s44
      %s68 = sphi 0, %s70
      %s71 = sphi 0, %s68
      %s72 = sphi 0, %s71
      %s88 = sphi 0, %s72
      %s94 = sphi 0, %s96
      %s97 = sphi 0, %s94
      %s98 = sphi 0, %s97
      %s114 = sphi 0, %s98
      %s118 = sphi 0, %s118
      %s120 = sphi 0, %s118
      %s121 = sphi 0, %s120
      %s135 = sphi 0, %s121
      %s139 = sphi 0, %s139
      %s141 = sphi 0, %s139
      %s142 = sphi 0, %s141
      %s156 = sphi 0, %s142
      %s164 = sphi 0, %s166
      %s167 = sphi 0, %s164
      %s168 = sphi 0, %s167
      %s184 = sphi 0, %s168
      %s192 = sphi 0, %s194
      %s195 = sphi 0, %s192
      %s196 = sphi 0, %s195
      %s212 = sphi 0, %s196
      %s220 = sphi 0, %s222
      %s223 = sphi 0, %s220
      %s224 = sphi 0, %s223
      %s240 = sphi 0, %s224
    $region4: #{_lambda_.2} parent=1 // loop_header_branch
      %19 = sbr.rel (%p17) target = $region8
    $region5: #{_lambda_.2} parent=1 // loop_body
      %s21 = ssub.s32 %s16, 1
      %s22 = ssub.s32 %s16, 2
      %s29 = sadd.s32 1, %s24
      %p30 = scmp.ge.s32.totalorder %s29, 2
      %s31 = scalar_select %p30, 0, %s29
      %s32 = sadd.s32 1, %s23
      %s33 = scalar_select %p30, %s32, %s23
      %p34 = scmp.ge.s32.totalorder %s33, 2
      %s35 = scalar_select %p34, 0, %s33
      %s36 = ssub.s32 %s23, %s35
      %s37 = ssub.s32 %s24, %s31
      %s38 = sor.u32 %s36, %s37
      %p39 = scmp.eq.s32.totalorder %s38, 0
      %s41 = sadd.s32 %s40, 1
      %s42 = scalar_select %p39, %s40, %s41
      %p45 = pneg %p39
      %p46 = scmp.eq.s32.totalorder %s16, 3
      %p47 = por %p45, %p46
      %p48 = scmp.ne.s32.totalorder %s40, %s43
      %p49 = scmp.eq.s32.totalorder %s16, 0
      %p50 = por %p48, %p49
      %p51 = scmp.ne.s32.totalorder %s40, %s43
      %p52 = scmp.eq.s32.totalorder %s21, 3
      %p53 = por %p51, %p52
      %p54 = scmp.ne.s32.totalorder %s43, %s44
      %p55 = scmp.eq.s32.totalorder %s21, 0
      %p56 = por %p54, %p55
      %p57 = scmp.ne.s32.totalorder %s43, %s44
      %p58 = scmp.eq.s32.totalorder %s22, 3
      %p59 = por %p57, %p58
      %p61 = scmp.ne.s32.totalorder %s44, %s60
      %p62 = scmp.eq.s32.totalorder %s22, 0
      %p63 = por %p61, %p62
      %s64 = ssub.s32 %s23, %s35
      %s65 = ssub.s32 %s24, %s31
      %s66 = sor.u32 %s64, %s65
      %p67 = scmp.eq.s32.totalorder %s66, 0
      %s69 = sadd.s32 %s68, 1
      %s70 = scalar_select %p67, %s68, %s69
      %p73 = pneg %p67
      %p74 = scmp.eq.s32.totalorder %s16, 3
      %p75 = por %p73, %p74
      %p76 = scmp.ne.s32.totalorder %s68, %s71
      %p77 = scmp.eq.s32.totalorder %s16, 0
      %p78 = por %p76, %p77
      %p79 = scmp.ne.s32.totalorder %s68, %s71
      %p80 = scmp.eq.s32.totalorder %s21, 3
      %p81 = por %p79, %p80
      %p82 = scmp.ne.s32.totalorder %s71, %s72
      %p83 = scmp.eq.s32.totalorder %s21, 0
      %p84 = por %p82, %p83
      %p85 = scmp.ne.s32.totalorder %s71, %s72
      %p86 = scmp.eq.s32.totalorder %s22, 3
      %p87 = por %p85, %p86
      %p89 = scmp.ne.s32.totalorder %s72, %s88
      %p90 = scmp.eq.s32.totalorder %s22, 0
      %p91 = por %p89, %p90
      %s92 = ssub.s32 %s23, %s35
      %p93 = scmp.eq.s32.totalorder %s92, 0
      %s95 = sadd.s32 %s94, 1
      %s96 = scalar_select %p93, %s94, %s95
      %p99 = pneg %p93
      %p100 = scmp.eq.s32.totalorder %s16, 3
      %p101 = por %p99, %p100
      %p102 = scmp.ne.s32.totalorder %s94, %s97
      %p103 = scmp.eq.s32.totalorder %s16, 0
      %p104 = por %p102, %p103
      %p105 = scmp.ne.s32.totalorder %s94, %s97
      %p106 = scmp.eq.s32.totalorder %s21, 3
      %p107 = por %p105, %p106
      %p108 = scmp.ne.s32.totalorder %s97, %s98
      %p109 = scmp.eq.s32.totalorder %s21, 0
      %p110 = por %p108, %p109
      %p111 = scmp.ne.s32.totalorder %s97, %s98
      %p112 = scmp.eq.s32.totalorder %s22, 3
      %p113 = por %p111, %p112
      %p115 = scmp.ne.s32.totalorder %s98, %s114
      %p116 = scmp.eq.s32.totalorder %s22, 0
      %p117 = por %p115, %p116
      %s119 = sadd.s32 %s118, 1
      %p122 = scmp.eq.s32.totalorder %s16, 3
      %p123 = scmp.ne.s32.totalorder %s118, %s120
      %p124 = scmp.eq.s32.totalorder %s16, 0
      %p125 = por %p123, %p124
      %p126 = scmp.ne.s32.totalorder %s118, %s120
      %p127 = scmp.eq.s32.totalorder %s21, 3
      %p128 = por %p126, %p127
      %p129 = scmp.ne.s32.totalorder %s120, %s121
      %p130 = scmp.eq.s32.totalorder %s21, 0
      %p131 = por %p129, %p130
      %p132 = scmp.ne.s32.totalorder %s120, %s121
      %p133 = scmp.eq.s32.totalorder %s22, 3
      %p134 = por %p132, %p133
      %p136 = scmp.ne.s32.totalorder %s121, %s135
      %p137 = scmp.eq.s32.totalorder %s22, 0
      %p138 = por %p136, %p137
      %s140 = sadd.s32 %s139, 1
      %p143 = scmp.eq.s32.totalorder %s16, 3
      %p144 = scmp.ne.s32.totalorder %s139, %s141
      %p145 = scmp.eq.s32.totalorder %s16, 0
      %p146 = por %p144, %p145
      %p147 = scmp.ne.s32.totalorder %s139, %s141
      %p148 = scmp.eq.s32.totalorder %s21, 3
      %p149 = por %p147, %p148
      %p150 = scmp.ne.s32.totalorder %s141, %s142
      %p151 = scmp.eq.s32.totalorder %s21, 0
      %p152 = por %p150, %p151
      %p153 = scmp.ne.s32.totalorder %s141, %s142
      %p154 = scmp.eq.s32.totalorder %s22, 3
      %p155 = por %p153, %p154
      %p157 = scmp.ne.s32.totalorder %s142, %s156
      %p158 = scmp.eq.s32.totalorder %s22, 0
      %p159 = por %p157, %p158
      %s160 = ssub.s32 %s23, %s35
      %s161 = ssub.s32 %s24, %s31
      %s162 = sor.u32 %s160, %s161
      %p163 = scmp.eq.s32.totalorder %s162, 0
      %s165 = sadd.s32 %s164, 1
      %s166 = scalar_select %p163, %s164, %s165
      %p169 = pneg %p163
      %p170 = scmp.eq.s32.totalorder %s16, 3
      %p171 = por %p169, %p170
      %p172 = scmp.ne.s32.totalorder %s164, %s167
      %p173 = scmp.eq.s32.totalorder %s16, 0
      %p174 = por %p172, %p173
      %p175 = scmp.ne.s32.totalorder %s164, %s167
      %p176 = scmp.eq.s32.totalorder %s21, 3
      %p177 = por %p175, %p176
      %p178 = scmp.ne.s32.totalorder %s167, %s168
      %p179 = scmp.eq.s32.totalorder %s21, 0
      %p180 = por %p178, %p179
      %p181 = scmp.ne.s32.totalorder %s167, %s168
      %p182 = scmp.eq.s32.totalorder %s22, 3
      %p183 = por %p181, %p182
      %p185 = scmp.ne.s32.totalorder %s168, %s184
      %p186 = scmp.eq.s32.totalorder %s22, 0
      %p187 = por %p185, %p186
      %s188 = ssub.s32 %s23, %s35
      %s189 = ssub.s32 %s24, %s31
      %s190 = sor.u32 %s188, %s189
      %p191 = scmp.eq.s32.totalorder %s190, 0
      %s193 = sadd.s32 %s192, 1
      %s194 = scalar_select %p191, %s192, %s193
      %p197 = pneg %p191
      %p198 = scmp.eq.s32.totalorder %s16, 3
      %p199 = por %p197, %p198
      %p200 = scmp.ne.s32.totalorder %s192, %s195
      %p201 = scmp.eq.s32.totalorder %s16, 0
      %p202 = por %p200, %p201
      %p203 = scmp.ne.s32.totalorder %s192, %s195
      %p204 = scmp.eq.s32.totalorder %s21, 3
      %p205 = por %p203, %p204
      %p206 = scmp.ne.s32.totalorder %s195, %s196
      %p207 = scmp.eq.s32.totalorder %s21, 0
      %p208 = por %p206, %p207
      %p209 = scmp.ne.s32.totalorder %s195, %s196
      %p210 = scmp.eq.s32.totalorder %s22, 3
      %p211 = por %p209, %p210
      %p213 = scmp.ne.s32.totalorder %s196, %s212
      %p214 = scmp.eq.s32.totalorder %s22, 0
      %p215 = por %p213, %p214
      %s216 = ssub.s32 %s23, %s35
      %s217 = ssub.s32 %s24, %s31
      %s218 = sor.u32 %s216, %s217
      %p219 = scmp.eq.s32.totalorder %s218, 0
      %s221 = sadd.s32 %s220, 1
      %s222 = scalar_select %p219, %s220, %s221
      %p225 = pneg %p219
      %p226 = scmp.eq.s32.totalorder %s16, 3
      %p227 = por %p225, %p226
      %p228 = scmp.ne.s32.totalorder %s220, %s223
      %p229 = scmp.eq.s32.totalorder %s16, 0
      %p230 = por %p228, %p229
      %p231 = scmp.ne.s32.totalorder %s220, %s223
      %p232 = scmp.eq.s32.totalorder %s21, 3
      %p233 = por %p231, %p232
      %p234 = scmp.ne.s32.totalorder %s223, %s224
      %p235 = scmp.eq.s32.totalorder %s21, 0
      %p236 = por %p234, %p235
      %p237 = scmp.ne.s32.totalorder %s223, %s224
      %p238 = scmp.eq.s32.totalorder %s22, 3
      %p239 = por %p237, %p238
      %p241 = scmp.ne.s32.totalorder %s224, %s240
      %p242 = scmp.eq.s32.totalorder %s22, 0
      %p243 = por %p241, %p242
      %p244 = scmp.le.s32.totalorder 1, %s16
      %p245 = scmp.lt.s32.totalorder %s16, 5
      %p246 = pnand %p244, %p245
      %p247 = pneg %p246
      // Predicated region
      $region9: #{_lambda_.2} parent=5 // pred_check
        _
      $region10: #{_lambda_.2} parent=5 // pred_check_branch
        %249 = sbr.rel (%p246) target = $region12
      $region11: #{_lambda_.2} parent=5 // pred_region
        %s250 = ssub.s32 %s16, 1
        // Predicated region
        $region13: #{_lambda_.2} parent=11 // pred_check
          %p251 = pneg %p131
        $region14: #{_lambda_.2} parent=11 // pred_check_branch
          %253 = sbr.rel (%p251) target = $region16
        $region15: #{_lambda_.2} parent=11 // pred_region
          %s255 = ssub.s32 128, 128
          %256 = vsyncadd [#allocation3], %s255
          %s257 = sshll.u32 [#allocation2], 4
          %s258 = int_to_ptr.vmem [resolvable:$true] %s257
          %263 = dma.hbm_to_vmem [thread:$0]  %s3, 128, %s258, [#allocation3], 64, 64, 4
        $region16: #{_lambda_.2} parent=11 // pred_fallthru
          _
        // Predicated region
        $region17: #{_lambda_.2} parent=11 // pred_check
          %p264 = pneg %p152
        $region18: #{_lambda_.2} parent=11 // pred_check_branch
          %266 = sbr.rel (%p264) target = $region20
        $region19: #{_lambda_.2} parent=11 // pred_region
          %s268 = ssub.s32 16, 16
          %269 = vsyncadd [#allocation5], %s268
          %s271 = sshll.u32 [#allocation4], 4
          %s272 = int_to_ptr.vmem [resolvable:$true] %s271
          %274 = dma.hbm_to_vmem [thread:$0]  %s4, 16, %s272, [#allocation5]
        $region20: #{_lambda_.2} parent=11 // pred_fallthru
          _
      $region12: #{_lambda_.2} parent=5 // pred_fallthru
        _
      %p275 = scmp.lt.s32.totalorder %s16, 4
      // Predicated region
      $region21: #{_lambda_.2} parent=5 // pred_check
        %p276 = pneg %p275
      $region22: #{_lambda_.2} parent=5 // pred_check_branch
        %278 = sbr.rel (%p276) target = $region24
      $region23: #{_lambda_.2} parent=5 // pred_region
        // Predicated region
        $region25: #{_lambda_.2} parent=23 // pred_check
          %p279 = pneg %p50
        $region26: #{_lambda_.2} parent=23 // pred_check_branch
          %281 = sbr.rel (%p279) target = $region28
        $region27: #{_lambda_.2} parent=23 // pred_region
          %s282 = smul.u32 16, %s24
          %p283 = scmp.lt.s32.totalorder %s23, 1
          %s284 = scalar_select %p283, %s23, 1
          %p285 = scmp.lt.s32.totalorder %s282, 31
          %s286 = scalar_select %p285, %s282, 31
          %s287 = smul.addr %s284, 32
          %s288 = sadd.s32 %s286, %s287
          %s289 = smul.addr %s288, 4
          %s290 = scalar_lea.vmem %s0, %s289
          %s291 = smul.u32 16, %s24
        $region28: #{_lambda_.2} parent=23 // pred_fallthru
          _
        // Predicated region
        $region29: #{_lambda_.2} parent=23 // pred_check
          %p292 = pneg %p78
        $region30: #{_lambda_.2} parent=23 // pred_check_branch
          %294 = sbr.rel (%p292) target = $region32
        $region31: #{_lambda_.2} parent=23 // pred_region
          %s295 = smul.u32 16, %s24
          %p296 = scmp.lt.s32.totalorder %s23, 1
          %s297 = scalar_select %p296, %s23, 1
          %p298 = scmp.lt.s32.totalorder %s295, 31
          %s299 = scalar_select %p298, %s295, 31
          %s300 = smul.addr %s297, 32
          %s301 = sadd.s32 %s299, %s300
          %s302 = smul.addr %s301, 4
          %s303 = scalar_lea.vmem %s1, %s302
          %s304 = smul.u32 16, %s24
        $region32: #{_lambda_.2} parent=23 // pred_fallthru
          _
        // Predicated region
        $region33: #{_lambda_.2} parent=23 // pred_check
          %p305 = pneg %p104
        $region34: #{_lambda_.2} parent=23 // pred_check_branch
          %307 = sbr.rel (%p305) target = $region36
        $region35: #{_lambda_.2} parent=23 // pred_region
          %p308 = scmp.lt.s32.totalorder %s23, 1
          %s309 = scalar_select %p308, %s23, 1
          %s310 = smul.addr %s309, 4
          %s311 = smul.addr %s310, 4
          %s312 = scalar_lea.vmem %s2, %s311
        $region36: #{_lambda_.2} parent=23 // pred_fallthru
          _
      $region24: #{_lambda_.2} parent=5 // pred_fallthru
        _
      %p313 = scmp.le.s32.totalorder 1, %s16
      %p314 = scmp.lt.s32.totalorder %s16, 5
      %p315 = pnand %p313, %p314
      %p316 = pneg %p315
      // Predicated region
      $region37: #{_lambda_.2} parent=5 // pred_check
        _
      $region38: #{_lambda_.2} parent=5 // pred_check_branch
        %318 = sbr.rel (%p315) target = $region40
      $region39: #{_lambda_.2} parent=5 // pred_region
        %s319 = ssub.s32 %s16, 1
        // Predicated region
        $region41: #{_lambda_.2} parent=39 // pred_check
          %p320 = pneg %p131
        $region42: #{_lambda_.2} parent=39 // pred_check_branch
          %322 = sbr.rel (%p320) target = $region44
        $region43: #{_lambda_.2} parent=39 // pred_region
          %323 = dma.done [#allocation3], 128
        $region44: #{_lambda_.2} parent=39 // pred_fallthru
          _
        // Predicated region
        $region45: #{_lambda_.2} parent=39 // pred_check
          %p324 = pneg %p152
        $region46: #{_lambda_.2} parent=39 // pred_check_branch
          %326 = sbr.rel (%p324) target = $region48
        $region47: #{_lambda_.2} parent=39 // pred_region
          %327 = dma.done [#allocation5], 16
        $region48: #{_lambda_.2} parent=39 // pred_fallthru
          _
        %s328 = smul.u32 16, %s26
        %p329 = scmp.lt.s32.totalorder %s25, 1
        %s330 = scalar_select %p329, %s25, 1
        %p331 = scmp.lt.s32.totalorder %s328, 31
        %s332 = scalar_select %p331, %s328, 31
        %s333 = smul.addr %s330, 32
        %s334 = sadd.s32 %s332, %s333
        %s335 = smul.addr %s334, 4
        %s336 = scalar_lea.vmem %s0, %s335
        %p337 = pneg %p56
        %p338 = pneg %p53
        %s339 = smul.u32 16, %s26
        %p340 = scmp.lt.s32.totalorder %s25, 1
        %s341 = scalar_select %p340, %s25, 1
        %p342 = scmp.lt.s32.totalorder %s339, 31
        %s343 = scalar_select %p342, %s339, 31
        %s344 = smul.addr %s341, 32
        %s345 = sadd.s32 %s343, %s344
        %s346 = smul.addr %s345, 4
        %s347 = scalar_lea.vmem %s1, %s346
        %p348 = pneg %p84
        %p349 = pneg %p81
        %p350 = scmp.lt.s32.totalorder %s25, 1
        %s351 = scalar_select %p350, %s25, 1
        %s352 = smul.addr %s351, 4
        %s353 = smul.addr %s352, 4
        %s354 = scalar_lea.vmem %s2, %s353
        %p355 = pneg %p110
        %p356 = pneg %p107
        %p357 = pneg %p131
        %p358 = pneg %p128
        %p359 = pneg %p152
        %p360 = pneg %p149
        %p361 = pneg %p180
        %p362 = pneg %p177
        %s363 = smul.u32 16, %s26
        %p364 = scmp.lt.s32.totalorder %s25, 1
        %s365 = scalar_select %p364, %s25, 1
        %p366 = scmp.lt.s32.totalorder %s363, 31
        %s367 = scalar_select %p366, %s363, 31
        %s368 = smul.addr %s367, 2
        %s369 = smul.addr %s365, 64
        %s370 = sadd.s32 %s368, %s369
        %s371 = smul.addr %s370, 4
        %s372 = scalar_lea.vmem %s5, %s371
        %p373 = pneg %p208
        %p374 = pneg %p205
        %s375 = sand.u32 %s195, 1
        %s376 = sand.u32 %s195, 1
        %s377 = smul.addr %s376, 32
        %s378 = scalar_lea.vmem [#allocation6], %s377
        %p379 = pneg %p236
        %p380 = pneg %p233
        %s381 = smul.u32 16, %s26
        %p382 = scmp.lt.s32.totalorder %s25, 1
        %s383 = scalar_select %p382, %s25, 1
        %p384 = scmp.lt.s32.totalorder %s381, 31
        %s385 = scalar_select %p384, %s381, 31
        %s386 = smul.addr %s383, 32
        %s387 = sadd.s32 %s385, %s386
        %s388 = smul.addr %s387, 4
        %s389 = scalar_lea.vmem %s7, %s388
        %s390 = smul.u32 16, %s26
        %p391 = scmp.lt.s32.totalorder %s25, 1
        %s392 = scalar_select %p391, %s25, 1
        %p393 = scmp.lt.s32.totalorder %s390, 31
        %s394 = scalar_select %p393, %s390, 31
        %s395 = smul.addr %s392, 32
        %s396 = sadd.s32 %s394, %s395
        %s397 = smul.addr %s396, 4
        %s398 = scalar_lea.vmem %s0, %s397
        %s399 = smul.u32 16, %s26
        %s400 = smul.u32 16, %s26
        %p401 = scmp.lt.s32.totalorder %s25, 1
        %s402 = scalar_select %p401, %s25, 1
        %p403 = scmp.lt.s32.totalorder %s400, 31
        %s404 = scalar_select %p403, %s400, 31
        %s405 = smul.addr %s402, 32
        %s406 = sadd.s32 %s404, %s405
        %s407 = smul.addr %s406, 4
        %s408 = scalar_lea.vmem %s1, %s407
        %s409 = smul.u32 16, %s26
        %p410 = scmp.lt.s32.totalorder %s25, 1
        %s411 = scalar_select %p410, %s25, 1
        %s412 = smul.addr %s411, 4
        %s413 = smul.addr %s412, 4
        %s414 = scalar_lea.vmem %s2, %s413
        %s415 = smul.u32 16, %s26
        %p416 = scmp.lt.s32.totalorder %s25, 1
        %s417 = scalar_select %p416, %s25, 1
        %p418 = scmp.lt.s32.totalorder %s415, 31
        %s419 = scalar_select %p418, %s415, 31
        %s420 = smul.addr %s419, 2
        %s421 = smul.addr %s417, 64
        %s422 = sadd.s32 %s420, %s421
        %s423 = smul.addr %s422, 4
        %s424 = scalar_lea.vmem %s5, %s423
        %s425 = smul.u32 16, %s26
        %s426 = smul.u32 16, %s26
        %p427 = scmp.lt.s32.totalorder %s25, 1
        %s428 = scalar_select %p427, %s25, 1
        %p429 = scmp.lt.s32.totalorder %s426, 31
        %s430 = scalar_select %p429, %s426, 31
        %s431 = smul.addr %s428, 32
        %s432 = sadd.s32 %s430, %s431
        %s433 = smul.addr %s432, 4
        %s434 = scalar_lea.vmem %s7, %s433
        %s435 = smul.u32 16, %s26
        %v437 = vld [vmem:[%s408] sm:$0xf]
        %v438 = vld [vmem:[%s408 + $0x4] sm:$0xf]
        %v439 = vld [vmem:[%s408 + $0x8] sm:$0xf]
        %v440 = vld [vmem:[%s408 + $0xc] sm:$0xf]
        %v441 = vld [vmem:[%s408 + $0x10] sm:$0xf]
        %v442 = vld [vmem:[%s408 + $0x14] sm:$0xf]
        %v443 = vld [vmem:[%s408 + $0x18] sm:$0xf]
        %v444 = vld [vmem:[%s408 + $0x1c] sm:$0xf]
        %v445 = vld [vmem:[%s408 + $0x20] sm:$0xf]
        %v446 = vld [vmem:[%s408 + $0x24] sm:$0xf]
        %v447 = vld [vmem:[%s408 + $0x28] sm:$0xf]
        %v448 = vld [vmem:[%s408 + $0x2c] sm:$0xf]
        %v449 = vld [vmem:[%s408 + $0x30] sm:$0xf]
        %v450 = vld [vmem:[%s408 + $0x34] sm:$0xf]
        %v451 = vld [vmem:[%s408 + $0x38] sm:$0xf]
        %v452 = vld [vmem:[%s408 + $0x3c] sm:$0xf]
        %v453 = vld [vmem:[%s414] sm:$0xff]
        %v454 = vld [vmem:[%s414 + $0x8] sm:$0xff]
        %v471 = vunpack.c.l.b16 %v437
        %v472 = vunpack.c.l.b16 %v438
        %v473 = vunpack.c.l.b16 %v439
        %v474 = vunpack.c.l.b16 %v440
        %v475 = vunpack.c.l.b16 %v441
        %v476 = vunpack.c.l.b16 %v442
        %v477 = vunpack.c.l.b16 %v443
        %v478 = vunpack.c.l.b16 %v444
        %v479 = vunpack.c.l.b16 %v445
        %v480 = vunpack.c.l.b16 %v446
        %v481 = vunpack.c.l.b16 %v447
        %v482 = vunpack.c.l.b16 %v448
        %v483 = vunpack.c.l.b16 %v449
        %v484 = vunpack.c.l.b16 %v450
        %v485 = vunpack.c.l.b16 %v451
        %v486 = vunpack.c.l.b16 %v452
        %v487 = vpack.c.b16 %v472, %v471
        %v488 = vpack.c.b16 %v474, %v473
        %v489 = vpack.c.b16 %v476, %v475
        %v490 = vpack.c.b16 %v478, %v477
        %v491 = vpack.c.b16 %v480, %v479
        %v492 = vpack.c.b16 %v482, %v481
        %v493 = vpack.c.b16 %v484, %v483
        %v494 = vpack.c.b16 %v486, %v485
        %v497 = vunpack.c.l.b16 %v453
        %v498 = vunpack.c.h.b16 %v453
        %v499 = vunpack.c.l.b16 %v454
        %v500 = vunpack.c.h.b16 %v454
        %v501 = vpack.c.b16 %v499, %v497
        %v502 = vpack.c.b16 %v500, %v498
        %vm505 = vcmask 130048
        %v507 = vsel %vm505, %v487, 0
        %v510 = vsel %vm505, %v488, 0
        %v513 = vsel %vm505, %v489, 0
        %v516 = vsel %vm505, %v490, 0
        %v519 = vsel %vm505, %v491, 0
        %v522 = vsel %vm505, %v492, 0
        %v525 = vsel %vm505, %v493, 0
        %v528 = vsel %vm505, %v494, 0
        %530 = vmatprep.subr.bf16.mxu0 %v502
        %531 = vmatpush1.bf16.msra.mxu0 %v501
        %532 = vmatprep.subr.bf16.mxu0 0
        %533 = vmatpush1.bf16.msra.mxu0 0
        %534 = vmatprep.subr.bf16.mxu0 0
        %535 = vmatpush1.bf16.msra.mxu0 0
        %536 = vmatprep.subr.bf16.mxu0 0
        %537 = vmatpush1.bf16.msra.mxu0 0
        %538 = vmatprep.subr.bf16.mxu0 0
        %539 = vmatpush1.bf16.msra.mxu0 0
        %540 = vmatprep.subr.bf16.mxu0 0
        %541 = vmatpush1.bf16.msra.mxu0 0
        %542 = vmatprep.subr.bf16.mxu0 0
        %543 = vmatpush1.bf16.msra.mxu0 0
        %544 = vmatprep.subr.bf16.mxu0 0
        %545 = vmatpush1.bf16.msra.mxu0 0
        %546 = vmatprep.subr.bf16.mxu0 0
        %547 = vmatpush1.bf16.msra.mxu0 0
        %548 = vmatprep.subr.bf16.mxu0 0
        %549 = vmatpush1.bf16.msra.mxu0 0
        %550 = vmatprep.subr.bf16.mxu0 0
        %551 = vmatpush1.bf16.msra.mxu0 0
        %552 = vmatprep.subr.bf16.mxu0 0
        %553 = vmatpush1.bf16.msra.mxu0 0
        %554 = vmatprep.subr.bf16.mxu0 0
        %555 = vmatpush1.bf16.msra.mxu0 0
        %556 = vmatprep.subr.bf16.mxu0 0
        %557 = vmatpush1.bf16.msra.mxu0 0
        %558 = vmatprep.subr.bf16.mxu0 0
        %559 = vmatpush1.bf16.msra.mxu0 0
        %560 = vmatprep.subr.bf16.mxu0 0
        %561 = vmatpush1.bf16.msra.mxu0 0
        %562 = vmatprep.mubr.bf16.mxu0 0
        %563 = vmatmul.mubr.bf16.gmra.mrb[0].mxu0 %v507
        %v564 = vpop.f32.mrb[0].mxu0
        %v565 = vadd.f32 0.0, %v564
        %v566 = vpop.f32.mrb[0].mxu0
        %v567 = vadd.f32 0.0, %v566
        %v568 = vpop.f32.mrb[0].mxu0
        %v569 = vadd.f32 0.0, %v568
        %v570 = vpop.f32.mrb[0].mxu0
        %v571 = vadd.f32 0.0, %v570
        %572 = vmatprep.mubr.bf16.mxu0 0
        %573 = vmatmul.mubr.bf16.gmra.mrb[0].mxu0 %v510
        %v574 = vpop.f32.mrb[0].mxu0
        %v575 = vadd.f32 0.0, %v574
        %v576 = vpop.f32.mrb[0].mxu0
        %v577 = vadd.f32 0.0, %v576
        %v578 = vpop.f32.mrb[0].mxu0
        %v579 = vadd.f32 0.0, %v578
        %v580 = vpop.f32.mrb[0].mxu0
        %v581 = vadd.f32 0.0, %v580
        %582 = vmatprep.mubr.bf16.mxu0 0
        %583 = vmatmul.mubr.bf16.gmra.mrb[0].mxu0 %v513
        %v584 = vpop.f32.mrb[0].mxu0
        %v585 = vadd.f32 0.0, %v584
        %v586 = vpop.f32.mrb[0].mxu0
        %v587 = vadd.f32 0.0, %v586
        %v588 = vpop.f32.mrb[0].mxu0
        %v589 = vadd.f32 0.0, %v588
        %v590 = vpop.f32.mrb[0].mxu0
        %v591 = vadd.f32 0.0, %v590
        %592 = vmatprep.mubr.bf16.mxu0 0
        %593 = vmatmul.mubr.bf16.gmra.mrb[0].mxu0 %v516
        %v594 = vpop.f32.mrb[0].mxu0
        %v595 = vadd.f32 0.0, %v594
        %v596 = vpop.f32.mrb[0].mxu0
        %v597 = vadd.f32 0.0, %v596
        %v598 = vpop.f32.mrb[0].mxu0
        %v599 = vadd.f32 0.0, %v598
        %v600 = vpop.f32.mrb[0].mxu0
        %v601 = vadd.f32 0.0, %v600
        %602 = vmatprep.mubr.bf16.mxu0 0
        %603 = vmatmul.mubr.bf16.gmra.mrb[0].mxu0 %v519
        %v604 = vpop.f32.mrb[0].mxu0
        %v605 = vadd.f32 0.0, %v604
        %v606 = vpop.f32.mrb[0].mxu0
        %v607 = vadd.f32 0.0, %v606
        %v608 = vpop.f32.mrb[0].mxu0
        %v609 = vadd.f32 0.0, %v608
        %v610 = vpop.f32.mrb[0].mxu0
        %v611 = vadd.f32 0.0, %v610
        %612 = vmatprep.mubr.bf16.mxu0 0
        %613 = vmatmul.mubr.bf16.gmra.mrb[0].mxu0 %v522
        %v614 = vpop.f32.mrb[0].mxu0
        %v615 = vadd.f32 0.0, %v614
        %v616 = vpop.f32.mrb[0].mxu0
        %v617 = vadd.f32 0.0, %v616
        %v618 = vpop.f32.mrb[0].mxu0
        %v619 = vadd.f32 0.0, %v618
        %v620 = vpop.f32.mrb[0].mxu0
        %v621 = vadd.f32 0.0, %v620
        %622 = vmatprep.mubr.bf16.mxu0 0
        %623 = vmatmul.mubr.bf16.gmra.mrb[0].mxu0 %v525
        %v624 = vpop.f32.mrb[0].mxu0
        %v625 = vadd.f32 0.0, %v624
        %v626 = vpop.f32.mrb[0].mxu0
        %v627 = vadd.f32 0.0, %v626
        %v628 = vpop.f32.mrb[0].mxu0
        %v629 = vadd.f32 0.0, %v628
        %v630 = vpop.f32.mrb[0].mxu0
        %v631 = vadd.f32 0.0, %v630
        %632 = vmatprep.mubr.bf16.mxu0 0
        %633 = vmatmul.mubr.bf16.gmra.mrb[0].mxu0 %v528
        %v634 = vpop.f32.mrb[0].mxu0
        %v635 = vadd.f32 0.0, %v634
        %v636 = vpop.f32.mrb[0].mxu0
        %v637 = vadd.f32 0.0, %v636
        %v638 = vpop.f32.mrb[0].mxu0
        %v639 = vadd.f32 0.0, %v638
        %v640 = vpop.f32.mrb[0].mxu0
        %v641 = vadd.f32 0.0, %v640
        %642 = vdwg.mxu0
        %v643 = vpack.c.bf16 %v569, %v565
        %v644 = vpack.c.bf16 %v571, %v567
        %v645 = vpack.c.bf16 %v579, %v575
        %v646 = vpack.c.bf16 %v581, %v577
        %v647 = vpack.c.bf16 %v589, %v585
        %v648 = vpack.c.bf16 %v591, %v587
        %v649 = vpack.c.bf16 %v599, %v595
        %v650 = vpack.c.bf16 %v601, %v597
        %v651 = vpack.c.bf16 %v609, %v605
        %v652 = vpack.c.bf16 %v611, %v607
        %v653 = vpack.c.bf16 %v619, %v615
        %v654 = vpack.c.bf16 %v621, %v617
        %v655 = vpack.c.bf16 %v629, %v625
        %v656 = vpack.c.bf16 %v631, %v627
        %v657 = vpack.c.bf16 %v639, %v635
        %v658 = vpack.c.bf16 %v641, %v637
        %v675 = vunpack.c.l.b16 %v643
        %v676 = vunpack.c.l.b16 %v644
        %v677 = vunpack.c.h.b16 %v643
        %v678 = vunpack.c.h.b16 %v644
        %v679 = vunpack.c.l.b16 %v645
        %v680 = vunpack.c.l.b16 %v646
        %v681 = vunpack.c.h.b16 %v645
        %v682 = vunpack.c.h.b16 %v646
        %v683 = vunpack.c.l.b16 %v647
        %v684 = vunpack.c.l.b16 %v648
        %v685 = vunpack.c.h.b16 %v647
        %v686 = vunpack.c.h.b16 %v648
        %v687 = vunpack.c.l.b16 %v649
        %v688 = vunpack.c.l.b16 %v650
        %v689 = vunpack.c.h.b16 %v649
        %v690 = vunpack.c.h.b16 %v650
        %v691 = vunpack.c.l.b16 %v651
        %v692 = vunpack.c.l.b16 %v652
        %v693 = vunpack.c.h.b16 %v651
        %v694 = vunpack.c.h.b16 %v652
        %v695 = vunpack.c.l.b16 %v653
        %v696 = vunpack.c.l.b16 %v654
        %v697 = vunpack.c.h.b16 %v653
        %v698 = vunpack.c.h.b16 %v654
        %v699 = vunpack.c.l.b16 %v655
        %v700 = vunpack.c.l.b16 %v656
        %v701 = vunpack.c.h.b16 %v655
        %v702 = vunpack.c.h.b16 %v656
        %v703 = vunpack.c.l.b16 %v657
        %v704 = vunpack.c.l.b16 %v658
        %v705 = vunpack.c.h.b16 %v657
        %v706 = vunpack.c.h.b16 %v658
        %v707 = vpack.c.b16 %v676, %v675
        %v708 = vpack.c.b16 %v678, %v677
        %v709 = vpack.c.b16 %v680, %v679
        %v710 = vpack.c.b16 %v682, %v681
        %v711 = vpack.c.b16 %v684, %v683
        %v712 = vpack.c.b16 %v686, %v685
        %v713 = vpack.c.b16 %v688, %v687
        %v714 = vpack.c.b16 %v690, %v689
        %v715 = vpack.c.b16 %v692, %v691
        %v716 = vpack.c.b16 %v694, %v693
        %v717 = vpack.c.b16 %v696, %v695
        %v718 = vpack.c.b16 %v698, %v697
        %v719 = vpack.c.b16 %v700, %v699
        %v720 = vpack.c.b16 %v702, %v701
        %v721 = vpack.c.b16 %v704, %v703
        %v722 = vpack.c.b16 %v706, %v705
        %739 = vst [vmem:[%s424] sm:$0xff] %v707
        %740 = vst [vmem:[%s424 + $0x8] sm:$0xff] %v708
        %741 = vst [vmem:[%s424 + $0x10] sm:$0xff] %v709
        %742 = vst [vmem:[%s424 + $0x18] sm:$0xff] %v710
        %743 = vst [vmem:[%s424 + $0x20] sm:$0xff] %v711
        %744 = vst [vmem:[%s424 + $0x28] sm:$0xff] %v712
        %745 = vst [vmem:[%s424 + $0x30] sm:$0xff] %v713
        %746 = vst [vmem:[%s424 + $0x38] sm:$0xff] %v714
        %747 = vst [vmem:[%s424 + $0x40] sm:$0xff] %v715
        %748 = vst [vmem:[%s424 + $0x48] sm:$0xff] %v716
        %749 = vst [vmem:[%s424 + $0x50] sm:$0xff] %v717
        %750 = vst [vmem:[%s424 + $0x58] sm:$0xff] %v718
        %751 = vst [vmem:[%s424 + $0x60] sm:$0xff] %v719
        %752 = vst [vmem:[%s424 + $0x68] sm:$0xff] %v720
        %753 = vst [vmem:[%s424 + $0x70] sm:$0xff] %v721
        %754 = vst [vmem:[%s424 + $0x78] sm:$0xff] %v722
        %v755 = vld [vmem:[%s398] sm:$0xf]
        %v756 = vld [vmem:[%s398 + $0x4] sm:$0xf]
        %v757 = vld [vmem:[%s398 + $0x8] sm:$0xf]
        %v758 = vld [vmem:[%s398 + $0xc] sm:$0xf]
        %v759 = vld [vmem:[%s398 + $0x10] sm:$0xf]
        %v760 = vld [vmem:[%s398 + $0x14] sm:$0xf]
        %v761 = vld [vmem:[%s398 + $0x18] sm:$0xf]
        %v762 = vld [vmem:[%s398 + $0x1c] sm:$0xf]
        %v763 = vld [vmem:[%s398 + $0x20] sm:$0xf]
        %v764 = vld [vmem:[%s398 + $0x24] sm:$0xf]
        %v765 = vld [vmem:[%s398 + $0x28] sm:$0xf]
        %v766 = vld [vmem:[%s398 + $0x2c] sm:$0xf]
        %v767 = vld [vmem:[%s398 + $0x30] sm:$0xf]
        %v768 = vld [vmem:[%s398 + $0x34] sm:$0xf]
        %v769 = vld [vmem:[%s398 + $0x38] sm:$0xf]
        %v770 = vld [vmem:[%s398 + $0x3c] sm:$0xf]
        %v771 = vld [vmem:[#allocation2] sm:$0xf]
        %v772 = vld [vmem:[#allocation2 + $0x4] sm:$0xf]
        %v789 = vunpack.c.l.b16 %v755
        %v790 = vunpack.c.l.b16 %v756
        %v791 = vunpack.c.l.b16 %v757
        %v792 = vunpack.c.l.b16 %v758
        %v793 = vunpack.c.l.b16 %v759
        %v794 = vunpack.c.l.b16 %v760
        %v795 = vunpack.c.l.b16 %v761
        %v796 = vunpack.c.l.b16 %v762
        %v797 = vunpack.c.l.b16 %v763
        %v798 = vunpack.c.l.b16 %v764
        %v799 = vunpack.c.l.b16 %v765
        %v800 = vunpack.c.l.b16 %v766
        %v801 = vunpack.c.l.b16 %v767
        %v802 = vunpack.c.l.b16 %v768
        %v803 = vunpack.c.l.b16 %v769
        %v804 = vunpack.c.l.b16 %v770
        %v805 = vpack.c.b16 %v790, %v789
        %v806 = vpack.c.b16 %v792, %v791
        %v807 = vpack.c.b16 %v794, %v793
        %v808 = vpack.c.b16 %v796, %v795
        %v809 = vpack.c.b16 %v798, %v797
        %v810 = vpack.c.b16 %v800, %v799
        %v811 = vpack.c.b16 %v802, %v801
        %v812 = vpack.c.b16 %v804, %v803
        %v815 = vunpack.c.l.b16 %v771
        %v816 = vunpack.c.l.b16 %v772
        %v817 = vpack.c.b16 %v816, %v815
        %v820 = vsel %vm505, %v805, 0
        %v823 = vsel %vm505, %v806, 0
        %v826 = vsel %vm505, %v807, 0
        %v829 = vsel %vm505, %v808, 0
        %v832 = vsel %vm505, %v809, 0
        %v835 = vsel %vm505, %v810, 0
        %v838 = vsel %vm505, %v811, 0
        %v841 = vsel %vm505, %v812, 0
        %843 = vmatprep.subr.bf16.mxu0 0
        %844 = vmatpush1.bf16.msra.mxu0 %v817
        %845 = vmatprep.subr.bf16.mxu0 0
        %846 = vmatpush1.bf16.msra.mxu0 0
        %847 = vmatprep.subr.bf16.mxu0 0
        %848 = vmatpush1.bf16.msra.mxu0 0
        %849 = vmatprep.subr.bf16.mxu0 0
        %850 = vmatpush1.bf16.msra.mxu0 0
        %851 = vmatprep.subr.bf16.mxu0 0
        %852 = vmatpush1.bf16.msra.mxu0 0
        %853 = vmatprep.subr.bf16.mxu0 0
        %854 = vmatpush1.bf16.msra.mxu0 0
        %855 = vmatprep.subr.bf16.mxu0 0
        %856 = vmatpush1.bf16.msra.mxu0 0
        %857 = vmatprep.subr.bf16.mxu0 0
        %858 = vmatpush1.bf16.msra.mxu0 0
        %859 = vmatprep.subr.bf16.mxu0 0
        %860 = vmatpush1.bf16.msra.mxu0 0
        %861 = vmatprep.subr.bf16.mxu0 0
        %862 = vmatpush1.bf16.msra.mxu0 0
        %863 = vmatprep.subr.bf16.mxu0 0
        %864 = vmatpush1.bf16.msra.mxu0 0
        %865 = vmatprep.subr.bf16.mxu0 0
        %866 = vmatpush1.bf16.msra.mxu0 0
        %867 = vmatprep.subr.bf16.mxu0 0
        %868 = vmatpush1.bf16.msra.mxu0 0
        %869 = vmatprep.subr.bf16.mxu0 0
        %870 = vmatpush1.bf16.msra.mxu0 0
        %871 = vmatprep.subr.bf16.mxu0 0
        %872 = vmatpush1.bf16.msra.mxu0 0
        %873 = vmatprep.subr.bf16.mxu0 0
        %874 = vmatpush1.bf16.msra.mxu0 0
        %875 = vmatprep.mubr.bf16.mxu0 0
        %876 = vmatmul.mubr.bf16.gmra.mrb[0].mxu0 %v820
        %v877 = vpop.f32.mrb[0].mxu0
        %v878 = vadd.f32 0.0, %v877
        %v879 = vpop.f32.mrb[0].mxu0
        %v880 = vpop.f32.mrb[0].mxu0
        %v881 = vadd.f32 0.0, %v880
        %v882 = vpop.f32.mrb[0].mxu0
        %883 = vmatprep.mubr.bf16.mxu0 0
        %884 = vmatmul.mubr.bf16.gmra.mrb[0].mxu0 %v823
        %v885 = vpop.f32.mrb[0].mxu0
        %v886 = vadd.f32 0.0, %v885
        %v887 = vpop.f32.mrb[0].mxu0
        %v888 = vpop.f32.mrb[0].mxu0
        %v889 = vadd.f32 0.0, %v888
        %v890 = vpop.f32.mrb[0].mxu0
        %891 = vmatprep.mubr.bf16.mxu0 0
        %892 = vmatmul.mubr.bf16.gmra.mrb[0].mxu0 %v826
        %v893 = vpop.f32.mrb[0].mxu0
        %v894 = vadd.f32 0.0, %v893
        %v895 = vpop.f32.mrb[0].mxu0
        %v896 = vpop.f32.mrb[0].mxu0
        %v897 = vadd.f32 0.0, %v896
        %v898 = vpop.f32.mrb[0].mxu0
        %899 = vmatprep.mubr.bf16.mxu0 0
        %900 = vmatmul.mubr.bf16.gmra.mrb[0].mxu0 %v829
        %v901 = vpop.f32.mrb[0].mxu0
        %v902 = vadd.f32 0.0, %v901
        %v903 = vpop.f32.mrb[0].mxu0
        %v904 = vpop.f32.mrb[0].mxu0
        %v905 = vadd.f32 0.0, %v904
        %v906 = vpop.f32.mrb[0].mxu0
        %907 = vmatprep.mubr.bf16.mxu0 0
        %908 = vmatmul.mubr.bf16.gmra.mrb[0].mxu0 %v832
        %v909 = vpop.f32.mrb[0].mxu0
        %v910 = vadd.f32 0.0, %v909
        %v911 = vpop.f32.mrb[0].mxu0
        %v912 = vpop.f32.mrb[0].mxu0
        %v913 = vadd.f32 0.0, %v912
        %v914 = vpop.f32.mrb[0].mxu0
        %915 = vmatprep.mubr.bf16.mxu0 0
        %916 = vmatmul.mubr.bf16.gmra.mrb[0].mxu0 %v835
        %v917 = vpop.f32.mrb[0].mxu0
        %v918 = vadd.f32 0.0, %v917
        %v919 = vpop.f32.mrb[0].mxu0
        %v920 = vpop.f32.mrb[0].mxu0
        %v921 = vadd.f32 0.0, %v920
        %v922 = vpop.f32.mrb[0].mxu0
        %923 = vmatprep.mubr.bf16.mxu0 0
        %924 = vmatmul.mubr.bf16.gmra.mrb[0].mxu0 %v838
        %v925 = vpop.f32.mrb[0].mxu0
        %v926 = vadd.f32 0.0, %v925
        %v927 = vpop.f32.mrb[0].mxu0
        %v928 = vpop.f32.mrb[0].mxu0
        %v929 = vadd.f32 0.0, %v928
        %v930 = vpop.f32.mrb[0].mxu0
        %931 = vmatprep.mubr.bf16.mxu0 0
        %932 = vmatmul.mubr.bf16.gmra.mrb[0].mxu0 %v841
        %v933 = vpop.f32.mrb[0].mxu0
        %v934 = vadd.f32 0.0, %v933
        %v935 = vpop.f32.mrb[0].mxu0
        %v936 = vpop.f32.mrb[0].mxu0
        %v937 = vadd.f32 0.0, %v936
        %v938 = vpop.f32.mrb[0].mxu0
        %939 = vdwg.mxu0
        %v940 = vld [vmem:[#allocation4] sm:$0x1]
        %v942 = vlaneseq
        %v943 = vshrl.u32 %v942, 7
        %v944 = vsub.s32 0, %v943
        %v945 = vrot.slane %v940, %v944
        %v947 = vadd.f32 %v878, %v945
        %v948 = vadd.f32 %v881, %v945
        %v949 = vadd.f32 %v886, %v945
        %v950 = vadd.f32 %v889, %v945
        %v951 = vadd.f32 %v894, %v945
        %v952 = vadd.f32 %v897, %v945
        %v953 = vadd.f32 %v902, %v945
        %v954 = vadd.f32 %v905, %v945
        %v955 = vadd.f32 %v910, %v945
        %v956 = vadd.f32 %v913, %v945
        %v957 = vadd.f32 %v918, %v945
        %v958 = vadd.f32 %v921, %v945
        %v959 = vadd.f32 %v926, %v945
        %v960 = vadd.f32 %v929, %v945
        %v961 = vadd.f32 %v934, %v945
        %v962 = vadd.f32 %v937, %v945
        %963 = vxpose.xlu0.b32.start [1/16] %v947, 128
        %964 = vxpose.xlu0.b32.cont [2/16] %v948, 128
        %965 = vxpose.xlu0.b32.cont [3/16] %v949, 128
        %966 = vxpose.xlu0.b32.cont [4/16] %v950, 128
        %967 = vxpose.xlu0.b32.cont [5/16] %v951, 128
        %968 = vxpose.xlu0.b32.cont [6/16] %v952, 128
        %969 = vxpose.xlu0.b32.cont [7/16] %v953, 128
        %970 = vxpose.xlu0.b32.cont [8/16] %v954, 128
        %971 = vxpose.xlu0.b32.cont [9/16] %v955, 128
        %972 = vxpose.xlu0.b32.cont [10/16] %v956, 128
        %973 = vxpose.xlu0.b32.cont [11/16] %v957, 128
        %974 = vxpose.xlu0.b32.cont [12/16] %v958, 128
        %975 = vxpose.xlu0.b32.cont [13/16] %v959, 128
        %976 = vxpose.xlu0.b32.cont [14/16] %v960, 128
        %977 = vxpose.xlu0.b32.cont [15/16] %v961, 128
        %978 = vxpose.xlu0.b32.end [16/16] %v962, 128
        %v979 = vpop.trf.xlu0
        %v980 = vpop.trf.xlu0
        %v981 = vpop.trf.xlu0
        %v982 = vpop.trf.xlu0
        %v983 = vpop.trf.xlu0
        %v984 = vpop.trf.xlu0
        %v985 = vpop.trf.xlu0
        %v986 = vpop.trf.xlu0
        %v987 = vpop.trf.xlu0
        %v988 = vpop.trf.xlu0
        %v989 = vpop.trf.xlu0
        %v990 = vpop.trf.xlu0
        %v991 = vpop.trf.xlu0
        %v992 = vpop.trf.xlu0
        %v993 = vpop.trf.xlu0
        %v994 = vpop.trf.xlu0
        %995 = vst [vmem:[%s378] sm:$0xff] %v979
        %996 = vst [vmem:[%s378 + $0x8] sm:$0xff] %v980
        %997 = vst [vmem:[%s378 + $0x10] sm:$0xff] %v981
        %998 = vst [vmem:[%s378 + $0x18] sm:$0xff] %v982
        %v999 = vpack.c.bf16 %v881, %v878
        %v1000 = vpack.c.bf16 %v889, %v886
        %v1001 = vpack.c.bf16 %v897, %v894
        %v1002 = vpack.c.bf16 %v905, %v902
        %v1003 = vpack.c.bf16 %v913, %v910
        %v1004 = vpack.c.bf16 %v921, %v918
        %v1005 = vpack.c.bf16 %v929, %v926
        %v1006 = vpack.c.bf16 %v937, %v934
        %v1015 = vunpack.c.l.b16 %v999
        %v1016 = vunpack.c.h.b16 %v999
        %v1017 = vunpack.c.l.b16 %v1000
        %v1018 = vunpack.c.h.b16 %v1000
        %v1019 = vunpack.c.l.b16 %v1001
        %v1020 = vunpack.c.h.b16 %v1001
        %v1021 = vunpack.c.l.b16 %v1002
        %v1022 = vunpack.c.h.b16 %v1002
        %v1023 = vunpack.c.l.b16 %v1003
        %v1024 = vunpack.c.h.b16 %v1003
        %v1025 = vunpack.c.l.b16 %v1004
        %v1026 = vunpack.c.h.b16 %v1004
        %v1027 = vunpack.c.l.b16 %v1005
        %v1028 = vunpack.c.h.b16 %v1005
        %v1029 = vunpack.c.l.b16 %v1006
        %v1030 = vunpack.c.h.b16 %v1006
        %v1031 = vpack.c.b16 %v1015, %v1015
        %v1032 = vpack.c.b16 %v1016, %v1016
        %v1033 = vpack.c.b16 %v1017, %v1017
        %v1034 = vpack.c.b16 %v1018, %v1018
        %v1035 = vpack.c.b16 %v1019, %v1019
        %v1036 = vpack.c.b16 %v1020, %v1020
        %v1037 = vpack.c.b16 %v1021, %v1021
        %v1038 = vpack.c.b16 %v1022, %v1022
        %v1039 = vpack.c.b16 %v1023, %v1023
        %v1040 = vpack.c.b16 %v1024, %v1024
        %v1041 = vpack.c.b16 %v1025, %v1025
        %v1042 = vpack.c.b16 %v1026, %v1026
        %v1043 = vpack.c.b16 %v1027, %v1027
        %v1044 = vpack.c.b16 %v1028, %v1028
        %v1045 = vpack.c.b16 %v1029, %v1029
        %v1046 = vpack.c.b16 %v1030, %v1030
        %1047 = vrot.lane.b32.xlu0 %v1031, 96
        %v1048 = vpop.permute.xlu0 %1047
        %1049 = vrot.lane.b32.xlu0 %v1032, 96
        %v1050 = vpop.permute.xlu0 %1049
        %1051 = vrot.lane.b32.xlu0 %v1033, 96
        %v1052 = vpop.permute.xlu0 %1051
        %1053 = vrot.lane.b32.xlu0 %v1034, 96
        %v1054 = vpop.permute.xlu0 %1053
        %1055 = vrot.lane.b32.xlu0 %v1035, 96
        %v1056 = vpop.permute.xlu0 %1055
        %1057 = vrot.lane.b32.xlu0 %v1036, 96
        %v1058 = vpop.permute.xlu0 %1057
        %1059 = vrot.lane.b32.xlu0 %v1037, 96
        %v1060 = vpop.permute.xlu0 %1059
        %1061 = vrot.lane.b32.xlu0 %v1038, 96
        %v1062 = vpop.permute.xlu0 %1061
        %1063 = vrot.lane.b32.xlu0 %v1039, 96
        %v1064 = vpop.permute.xlu0 %1063
        %1065 = vrot.lane.b32.xlu0 %v1040, 96
        %v1066 = vpop.permute.xlu0 %1065
        %1067 = vrot.lane.b32.xlu0 %v1041, 96
        %v1068 = vpop.permute.xlu0 %1067
        %1069 = vrot.lane.b32.xlu0 %v1042, 96
        %v1070 = vpop.permute.xlu0 %1069
        %1071 = vrot.lane.b32.xlu0 %v1043, 96
        %v1072 = vpop.permute.xlu0 %1071
        %1073 = vrot.lane.b32.xlu0 %v1044, 96
        %v1074 = vpop.permute.xlu0 %1073
        %1075 = vrot.lane.b32.xlu0 %v1045, 96
        %v1076 = vpop.permute.xlu0 %1075
        %1077 = vrot.lane.b32.xlu0 %v1046, 96
        %v1078 = vpop.permute.xlu0 %1077
        %vm1095 = vcmask 257024
        %1096 = vst.msk [vmem:[%s434] sm:$0xf] %vm1095, %v1048
        %1097 = vst.msk [vmem:[%s434 + $0x4] sm:$0xf] %vm1095, %v1050
        %1098 = vst.msk [vmem:[%s434 + $0x8] sm:$0xf] %vm1095, %v1052
        %1099 = vst.msk [vmem:[%s434 + $0xc] sm:$0xf] %vm1095, %v1054
        %1100 = vst.msk [vmem:[%s434 + $0x10] sm:$0xf] %vm1095, %v1056
        %1101 = vst.msk [vmem:[%s434 + $0x14] sm:$0xf] %vm1095, %v1058
        %1102 = vst.msk [vmem:[%s434 + $0x18] sm:$0xf] %vm1095, %v1060
        %1103 = vst.msk [vmem:[%s434 + $0x1c] sm:$0xf] %vm1095, %v1062
        %1104 = vst.msk [vmem:[%s434 + $0x20] sm:$0xf] %vm1095, %v1064
        %1105 = vst.msk [vmem:[%s434 + $0x24] sm:$0xf] %vm1095, %v1066
        %1106 = vst.msk [vmem:[%s434 + $0x28] sm:$0xf] %vm1095, %v1068
        %1107 = vst.msk [vmem:[%s434 + $0x2c] sm:$0xf] %vm1095, %v1070
        %1108 = vst.msk [vmem:[%s434 + $0x30] sm:$0xf] %vm1095, %v1072
        %1109 = vst.msk [vmem:[%s434 + $0x34] sm:$0xf] %vm1095, %v1074
        %1110 = vst.msk [vmem:[%s434 + $0x38] sm:$0xf] %vm1095, %v1076
        %1111 = vst.msk [vmem:[%s434 + $0x3c] sm:$0xf] %vm1095, %v1078
        %s1112 = smul.u32 16, %s26
        %p1113 = scmp.lt.s32.totalorder %s25, 1
        %s1114 = scalar_select %p1113, %s25, 1
        %p1115 = scmp.lt.s32.totalorder %s1112, 31
        %s1116 = scalar_select %p1115, %s1112, 31
        %s1117 = smul.addr %s1116, 2
        %s1118 = smul.addr %s1114, 64
        %s1119 = sadd.s32 %s1117, %s1118
        %s1120 = smul.addr %s1119, 4
        %s1121 = scalar_lea.vmem %s5, %s1120
        %s1122 = sand.u32 %s195, 1
        %s1123 = sand.u32 %s195, 1
        %s1124 = smul.addr %s1123, 32
        %s1125 = scalar_lea.vmem [#allocation6], %s1124
        %s1126 = smul.u32 16, %s26
        %p1127 = scmp.lt.s32.totalorder %s25, 1
        %s1128 = scalar_select %p1127, %s25, 1
        %p1129 = scmp.lt.s32.totalorder %s1126, 31
        %s1130 = scalar_select %p1129, %s1126, 31
        %s1131 = smul.addr %s1128, 32
        %s1132 = sadd.s32 %s1130, %s1131
        %s1133 = smul.addr %s1132, 4
        %s1134 = scalar_lea.vmem %s7, %s1133
        // Predicated region
        $region49: #{_lambda_.2} parent=39 // pred_check
          %p1135 = pneg %p177
        $region50: #{_lambda_.2} parent=39 // pred_check_branch
          %1137 = sbr.rel (%p1135) target = $region52
        $region51: #{_lambda_.2} parent=39 // pred_region
          %s1138 = smul.u32 16, %s26
        $region52: #{_lambda_.2} parent=39 // pred_fallthru
          _
        // Predicated region
        $region53: #{_lambda_.2} parent=39 // pred_check
          %p1139 = pneg %p205
        $region54: #{_lambda_.2} parent=39 // pred_check_branch
          %1141 = sbr.rel (%p1139) target = $region56
        $region55: #{_lambda_.2} parent=39 // pred_region
          %s1142 = smul.addr %s25, 8
          %s1143 = sadd.s32 %s26, %s1142
          %s1144 = smul.addr %s1143, 8
          %s1145 = scalar_lea.vmem %s6, %s1144
          // Predicated region
          $region57: #{_lambda_.2} parent=55 // pred_check
            _
          $region58: #{_lambda_.2} parent=55 // pred_check_branch
            %1147 = sbr.rel (0) target = $region60
          $region59: #{_lambda_.2} parent=55 // pred_region
            // Predicated region
            $region61: #{_lambda_.2} parent=59 // pred_check
              _
            $region62: #{_lambda_.2} parent=59 // pred_check_branch
              %1149 = sbr.rel (0) target = $region64
            $region63: #{_lambda_.2} parent=59 // pred_region
              // Predicated region
              $region76: #{_lambda_.2} parent=63 // pred_check
                _
              $region77: #{_lambda_.2} parent=63 // pred_check_branch
                %1170 = sbr.rel (0) target = $region79
              $region78: #{_lambda_.2} parent=63 // pred_region
                loop: start=0, step=1, limit=1
                $region80: #{_lambda_.2} parent=78 // loop_pre_header
                  _
                $region81: #{_lambda_.2} parent=78 // loop_header
                  %s1172 = sphi 0, %s1176
                  %p1173 = scmp.ge.s32.totalorder %s1172, 1
                  %s1177 = sphi %s1125, %s1125
                  %s1178 = sphi %s1145, %s1145
                $region82: #{_lambda_.2} parent=78 // loop_header_branch
                  %1175 = sbr.rel (%p1173) target = $region86
                $region83: #{_lambda_.2} parent=78 // loop_body
                  %v1179 = vld [vmem:[%s1177] sm:$0xff]
                  %1180 = vst [vmem:[%s1178] sm:$0xff] %v1179
                  %v1181 = vld [vmem:[%s1177 + $0x8] sm:$0xff]
                  %1182 = vst [vmem:[%s1178 + $0x10] sm:$0xff] %v1181
                  %v1183 = vld [vmem:[%s1177 + $0x10] sm:$0xff]
                  %1184 = vst [vmem:[%s1178 + $0x20] sm:$0xff] %v1183
                  %v1185 = vld [vmem:[%s1177 + $0x18] sm:$0xff]
                  %1186 = vst [vmem:[%s1178 + $0x30] sm:$0xff] %v1185
                $region84: #{_lambda_.2} parent=78 // loop_footer
                  %s1176 = sadd.s32 1, %s1172
                $region85: #{_lambda_.2} parent=78 // loop_footer_branch
                  %1171 = sbr.rel target = $region81
                $region86: #{_lambda_.2} parent=78 // loop_exit
                  _
              $region79: #{_lambda_.2} parent=63 // pred_fallthru
                _
              // Predicated region
              $region87: #{_lambda_.2} parent=63 // pred_check
                _
              $region88: #{_lambda_.2} parent=63 // pred_check_branch
                %1188 = sbr.rel target = $region90
              $region89: #{_lambda_.2} parent=63 // pred_region
                _
              $region90: #{_lambda_.2} parent=63 // pred_fallthru
                _
            $region64: #{_lambda_.2} parent=59 // pred_fallthru
              _
            // Predicated region
            $region65: #{_lambda_.2} parent=59 // pred_check
              _
            $region66: #{_lambda_.2} parent=59 // pred_check_branch
              %1151 = sbr.rel target = $region68
            $region67: #{_lambda_.2} parent=59 // pred_region
              loop: start=0, step=1, limit=1
              $region69: #{_lambda_.2} parent=67 // loop_pre_header
                _
              $region70: #{_lambda_.2} parent=67 // loop_header
                %s1154 = sphi 0, %s1158
                %p1155 = scmp.ge.s32.totalorder %s1154, 1
                %s1159 = sphi %s1125, %s1125
                %s1160 = sphi %s1145, %s1145
              $region71: #{_lambda_.2} parent=67 // loop_header_branch
                %1157 = sbr.rel (%p1155) target = $region75
              $region72: #{_lambda_.2} parent=67 // loop_body
                %v1161 = vld [vmem:[%s1159] sm:$0xff]
                %1162 = vst [vmem:[%s1160] sm:$0xff] %v1161
                %v1163 = vld [vmem:[%s1159 + $0x8] sm:$0xff]
                %1164 = vst [vmem:[%s1160 + $0x10] sm:$0xff] %v1163
                %v1165 = vld [vmem:[%s1159 + $0x10] sm:$0xff]
                %1166 = vst [vmem:[%s1160 + $0x20] sm:$0xff] %v1165
                %v1167 = vld [vmem:[%s1159 + $0x18] sm:$0xff]
                %1168 = vst [vmem:[%s1160 + $0x30] sm:$0xff] %v1167
              $region73: #{_lambda_.2} parent=67 // loop_footer
                %s1158 = sadd.s32 1, %s1154
              $region74: #{_lambda_.2} parent=67 // loop_footer_branch
                %1153 = sbr.rel target = $region70
              $region75: #{_lambda_.2} parent=67 // loop_exit
                _
            $region68: #{_lambda_.2} parent=59 // pred_fallthru
              _
          $region60: #{_lambda_.2} parent=55 // pred_fallthru
            _
          %1189 = vnop
        $region56: #{_lambda_.2} parent=39 // pred_fallthru
          _
        // Predicated region
        $region91: #{_lambda_.2} parent=39 // pred_check
          %p1190 = pneg %p233
        $region92: #{_lambda_.2} parent=39 // pred_check_branch
          %1192 = sbr.rel (%p1190) target = $region94
        $region93: #{_lambda_.2} parent=39 // pred_region
          %s1193 = smul.u32 16, %s26
        $region94: #{_lambda_.2} parent=39 // pred_fallthru
          _
      $region40: #{_lambda_.2} parent=5 // pred_fallthru
        _
      %p1194 = scmp.le.s32.totalorder 2, %s16
      // Predicated region
      $region95: #{_lambda_.2} parent=5 // pred_check
        %p1195 = pneg %p1194
      $region96: #{_lambda_.2} parent=5 // pred_check_branch
        %1197 = sbr.rel (%p1195) target = $region98
      $region97: #{_lambda_.2} parent=5 // pred_region
        %s1198 = ssub.s32 %s16, 2
        // Predicated region
        $region99: #{_lambda_.2} parent=97 // pred_check
          %p1199 = pneg %p183
        $region100: #{_lambda_.2} parent=97 // pred_check_branch
          %1201 = sbr.rel (%p1199) target = $region102
        $region101: #{_lambda_.2} parent=97 // pred_region
          %s1202 = smul.u32 16, %s28
          %p1203 = scmp.lt.s32.totalorder %s27, 1
          %s1204 = scalar_select %p1203, %s27, 1
          %p1205 = scmp.lt.s32.totalorder %s1202, 31
          %s1206 = scalar_select %p1205, %s1202, 31
          %s1207 = smul.addr %s1206, 2
          %s1208 = smul.addr %s1204, 64
          %s1209 = sadd.s32 %s1207, %s1208
          %s1210 = smul.addr %s1209, 4
          %s1211 = scalar_lea.vmem %s5, %s1210
        $region102: #{_lambda_.2} parent=97 // pred_fallthru
          _
        // Predicated region
        $region103: #{_lambda_.2} parent=97 // pred_check
          %p1212 = pneg %p211
        $region104: #{_lambda_.2} parent=97 // pred_check_branch
          %1214 = sbr.rel (%p1212) target = $region106
        $region105: #{_lambda_.2} parent=97 // pred_region
          %s1215 = sand.u32 %s196, 1
          %s1216 = sand.u32 %s196, 1
          %s1217 = smul.addr %s1216, 32
          %s1218 = scalar_lea.vmem [#allocation6], %s1217
        $region106: #{_lambda_.2} parent=97 // pred_fallthru
          _
        // Predicated region
        $region107: #{_lambda_.2} parent=97 // pred_check
          %p1219 = pneg %p239
        $region108: #{_lambda_.2} parent=97 // pred_check_branch
          %1221 = sbr.rel (%p1219) target = $region110
        $region109: #{_lambda_.2} parent=97 // pred_region
          %s1222 = smul.u32 16, %s28
          %p1223 = scmp.lt.s32.totalorder %s27, 1
          %s1224 = scalar_select %p1223, %s27, 1
          %p1225 = scmp.lt.s32.totalorder %s1222, 31
          %s1226 = scalar_select %p1225, %s1222, 31
          %s1227 = smul.addr %s1224, 32
          %s1228 = sadd.s32 %s1226, %s1227
          %s1229 = smul.addr %s1228, 4
          %s1230 = scalar_lea.vmem %s7, %s1229
        $region110: #{_lambda_.2} parent=97 // pred_fallthru
          _
      $region98: #{_lambda_.2} parent=5 // pred_fallthru
        _
    $region6: #{_lambda_.2} parent=1 // loop_footer
      %s20 = sadd.s32 1, %s16
    $region7: #{_lambda_.2} parent=1 // loop_footer_branch
      %15 = sbr.rel target = $region3
    $region8: #{_lambda_.2} parent=1 // loop_exit
      _
    %1231 = vsyncpa [#allocation3], 1
    %s1232 = scalar_lea.sflag [#allocation3], 1
    %1233 = vsyncpa %s1232, 1
    %1234 = vsyncpa [#allocation5], 1

</llo_original>
